<compile_context>
chip_gen: v7x
topology: tpu7x:2x2x1
jax: 0.10.0
libtpu: 0.0.40
codegen_flags: <defaults>
</compile_context>

<pallas_src>
import jax
import jax.numpy as jnp
from jax.experimental import pallas as pl
from jax.experimental.pallas import tpu as pltpu


def _vmem_limit_bytes(H, W, cin, width, cout, out_bytes):
    """Scoped-VMEM budget derived from the actual per-step working set."""
    bf = 2  # bf16
    x_blk = H * W * cin * bf
    o_blk = H * W * cout * out_bytes
    w_blk = (cin * width + 9 * width * width + width * cout) * bf
    bn_blk = (4 * width + 2 * cout) * 4
    pad_blk = (H + 2) * (W + 2) * width * bf
    interm = H * W * (2 * width + cout) * 4            # f32 value temporaries
    total = 2 * (x_blk + o_blk + w_blk + bn_blk) + pad_blk + interm + (8 << 20)
    # Keep <= ~40 MiB so v7x (64 MiB physical) retains headroom; floor for
    # compiler-internal scratch.
    return int(min(max(total, 24 << 20), 40 << 20))


# ---------------------------------------------------------------------------
# Fused bottleneck kernel (one image per grid step, full channels resident)
# ---------------------------------------------------------------------------
def _bottleneck_kernel(x_ref, w1_ref, s1_ref, b1_ref,
                       w2_ref, s2_ref, b2_ref,
                       w3_ref, s3_ref, b3_ref,
                       o_ref, pad_ref):
    # x_ref:  (1, H, W, Cin)   bf16
    # w1_ref: (Cin, width)     bf16     s1/b1: (1, width)  f32
    # w2_ref: (9, width, width) bf16    s2/b2: (1, width)  f32
    # w3_ref: (width, Cout)    bf16     s3/b3: (1, Cout)   f32
    # o_ref:  (1, H, W, Cout)
    # pad_ref: (H+2, W+2, width) bf16   VMEM halo scratch for the 3x3 conv
    H, W = o_ref.shape[1], o_ref.shape[2]
    cin = x_ref.shape[3]
    width = w1_ref.shape[1]
    cout = w3_ref.shape[1]
    M = H * W

    x2d = x_ref[0].reshape(M, cin)                       # bf16, reused as residual

    # ---- conv1 (1x1) -> bn1 -> relu ----------------------------------------
    t1 = jnp.dot(x2d, w1_ref[...], preferred_element_type=jnp.float32)
    t1 = jnp.maximum(t1 * s1_ref[...] + b1_ref[...], 0.0).astype(jnp.bfloat16)

    # ---- build zero-padded halo in VMEM (replaces wrapper-side jnp.pad) ----
    pad_ref[...] = jnp.zeros_like(pad_ref)
    pad_ref[pl.ds(1, H), pl.ds(1, W), :] = t1.reshape(H, W, width)

    # ---- conv2 (3x3, stride 1, pad 1) -> bn2 -> relu ------------------------
    # Local f32 accumulation (single logical accumulator, no 9x scratch RMW).
    xp = pad_ref[...]                                    # (H+2, W+2, width)
    acc2 = jnp.zeros((M, width), jnp.float32)
    for kw in range(3):
        col = xp[:, kw:kw + W, :]                        # only 3 W-offset slices
        for kh in range(3):
            patch = col[kh:kh + H].reshape(M, width)     # leading-axis slice: cheap
            acc2 = acc2 + jnp.dot(patch, w2_ref[kh * 3 + kw],
                                  preferred_element_type=jnp.float32)
    t2 = jnp.maximum(acc2 * s2_ref[...] + b2_ref[...], 0.0).astype(jnp.bfloat16)

    # ---- conv3 (1x1) -> bn3 -> + identity -> relu ---------------------------
    acc3 = jnp.dot(t2, w3_ref[...], preferred_element_type=jnp.float32)
    y = acc3 * s3_ref[...] + b3_ref[...] + x2d.astype(jnp.float32)
    o_ref[0] = jnp.maximum(y, 0.0).reshape(H, W, cout).astype(o_ref.dtype)


def bottleneck_forward(params, x, *, out_dtype=jnp.bfloat16):
    """Fused Bottleneck forward (stride=1, downsample=None).

    x: (N, H, W, inplanes) float32 or bfloat16, NHWC.
    Returns (N, H, W, planes*4) in `out_dtype` (bf16 by default to halve the
    output HBM stream; pass jnp.float32 for an f32 result).
    """
    N, H, W, cin = x.shape
    width = params['w1'].shape[1]
    cout = params['w3'].shape[1]
    assert cout == cin, "downsample=None requires inplanes == planes * expansion"
    assert params['w2'].shape == (9, width, width)

    x_bf16 = x.astype(jnp.bfloat16)
    out_bytes = jnp.dtype(out_dtype).itemsize

    grid = (N,)
    in_specs = [
        pl.BlockSpec((1, H, W, cin), lambda n: (n, 0, 0, 0)),       # x
        pl.BlockSpec((cin, width), lambda n: (0, 0)),               # w1
        pl.BlockSpec((1, width), lambda n: (0, 0)),                 # s1
        pl.BlockSpec((1, width), lambda n: (0, 0)),                 # b1
        pl.BlockSpec((9, width, width), lambda n: (0, 0, 0)),       # w2
        pl.BlockSpec((1, width), lambda n: (0, 0)),                 # s2
        pl.BlockSpec((1, width), lambda n: (0, 0)),                 # b2
        pl.BlockSpec((width, cout), lambda n: (0, 0)),              # w3
        pl.BlockSpec((1, cout), lambda n: (0, 0)),                  # s3
        pl.BlockSpec((1, cout), lambda n: (0, 0)),                  # b3
    ]

    return pl.pallas_call(
        _bottleneck_kernel,
        out_shape=jax.ShapeDtypeStruct((N, H, W, cout), out_dtype),
        grid_spec=pltpu.PrefetchScalarGridSpec(
            num_scalar_prefetch=0,
            grid=grid,
            in_specs=in_specs,
            out_specs=pl.BlockSpec((1, H, W, cout), lambda n: (n, 0, 0, 0)),
            scratch_shapes=[pltpu.VMEM((H + 2, W + 2, width), jnp.bfloat16)],
        ),
        compiler_params=pltpu.CompilerParams(
            dimension_semantics=("parallel",),
            vmem_limit_bytes=_vmem_limit_bytes(H, W, cin, width, cout, out_bytes),
        ),
    )(x_bf16, params['w1'], params['s1'], params['b1'],
      params['w2'], params['s2'], params['b2'],
      params['w3'], params['s3'], params['b3'])


# ---------------------------------------------------------------------------
# BatchNorm folding (inference mode)
# ---------------------------------------------------------------------------
def fuse_bn(gamma, beta, mean, var, eps=1e-5):
    scale = gamma / jnp.sqrt(var + eps)
    bias = beta - mean * scale
    return (scale.reshape(1, -1).astype(jnp.float32),
            bias.reshape(1, -1).astype(jnp.float32))


# ---------------------------------------------------------------------------
# Pure-JAX reference (same bf16 rounding points as the fused kernel)
# ---------------------------------------------------------------------------
def reference_forward(params, x):
    f32 = jnp.float32
    hp = jax.lax.Precision.HIGHEST
    N, H, W, cin = x.shape
    w1 = params['w1'].astype(f32)
    w2 = params['w2'].astype(f32)
    w3 = params['w3'].astype(f32)
    s1, b1 = params['s1'], params['b1']
    s2, b2 = params['s2'], params['b2']
    s3, b3 = params['s3'], params['b3']
    M = N * H * W
    width = w1.shape[1]

    xb = x.astype(jnp.bfloat16).astype(f32)
    t1 = jnp.maximum(jnp.dot(xb.reshape(M, cin), w1, precision=hp) * s1 + b1, 0.0)
    t1 = t1.astype(jnp.bfloat16).astype(f32)

    t1p = jnp.pad(t1.reshape(N, H, W, width), ((0, 0), (1, 1), (1, 1), (0, 0)))
    acc = jnp.zeros((M, width), f32)
    for kh in range(3):
        for kw in range(3):
            patch = t1p[:, kh:kh + H, kw:kw + W, :].reshape(M, width)
            acc = acc + jnp.dot(patch, w2[kh * 3 + kw], precision=hp)
    t2 = jnp.maximum(acc * s2 + b2, 0.0).astype(jnp.bfloat16).astype(f32)

    y = jnp.maximum(jnp.dot(t2, w3, precision=hp) * s3 + b3 + xb.reshape(M, cin), 0.0)
    return y.reshape(N, H, W, cin)


# ---------------------------------------------------------------------------
# Test harness
# ---------------------------------------------------------------------------
if __name__ == "__main__":
    # Small config consistent with the module: downsample=None requires
    # inplanes == planes * expansion.  NHWC x: (2, 8, 8, 256)  (NCHW: (2, 256, 8, 8)).
    planes = 64
    expansion = 4
    inplanes = planes * expansion
    width = planes                      # base_width=64, groups=1
    N, H, W = 2, 8, 8

    key = jax.random.PRNGKey(0)
    ks = jax.random.split(key, 8)

    def bn_raw(k, c):
        k1, k2, k3, k4 = jax.random.split(k, 4)
        gamma = 1.0 + 0.1 * jax.random.normal(k1, (c,), jnp.float32)
        beta = 0.1 * jax.random.normal(k2, (c,), jnp.float32)
        mean = 0.1 * jax.random.normal(k3, (c,), jnp.float32)
        var = jnp.abs(jax.random.normal(k4, (c,), jnp.float32)) + 0.5
        return fuse_bn(gamma, beta, mean, var)

    s1, b1 = bn_raw(ks[1], width)
    s2, b2 = bn_raw(ks[3], width)
    s3, b3 = bn_raw(ks[5], inplanes)
    params = {
        'w1': (0.1 * jax.random.normal(ks[0], (inplanes, width), jnp.float32)
               ).astype(jnp.bfloat16),
        's1': s1, 'b1': b1,
        'w2': (0.1 * jax.random.normal(ks[2], (9, width, width), jnp.float32)
               ).astype(jnp.bfloat16),
        's2': s2, 'b2': b2,
        'w3': (0.1 * jax.random.normal(ks[4], (width, inplanes), jnp.float32)
               ).astype(jnp.bfloat16),
        's3': s3, 'b3': b3,
    }
    x = jax.random.normal(ks[6], (N, H, W, inplanes), jnp.float32)

    fwd = jax.jit(bottleneck_forward)
    y = jax.block_until_ready(fwd(params, x))
    assert y.shape == (N, H, W, inplanes), y.shape

    ref = reference_forward(params, x)
    err = float(jnp.max(jnp.abs(y.astype(jnp.float32) - ref))
                / (jnp.max(jnp.abs(ref)) + 1e-6))
    assert err < 5e-2, f"mismatch: rel err {err}"
    print("KERNEL_OK")
</pallas_src>

<mosaic_0001>
module attributes {stable_mosaic.version = 11 : i64} {
  func.func @_bottleneck_kernel(%arg0: i32, %arg1: memref<1x8x8x256xbf16, #tpu.memory_space<vmem>>, %arg2: memref<256x64xbf16, #tpu.memory_space<vmem>>, %arg3: memref<1x64xf32, #tpu.memory_space<vmem>>, %arg4: memref<1x64xf32, #tpu.memory_space<vmem>>, %arg5: memref<9x64x64xbf16, #tpu.memory_space<vmem>>, %arg6: memref<1x64xf32, #tpu.memory_space<vmem>>, %arg7: memref<1x64xf32, #tpu.memory_space<vmem>>, %arg8: memref<64x256xbf16, #tpu.memory_space<vmem>>, %arg9: memref<1x256xf32, #tpu.memory_space<vmem>>, %arg10: memref<1x256xf32, #tpu.memory_space<vmem>>, %arg11: memref<1x8x8x256xbf16, #tpu.memory_space<vmem>>, %arg12: memref<10x10x64xbf16, #tpu.memory_space<vmem>>) attributes {dimension_semantics = [#tpu.dimension_semantics<parallel>], iteration_bounds = array<i64: 2>, scalar_prefetch = 0 : i64, scratch_operands = 1 : i64, tpu.core_type = #tpu.core_type<tc>, window_params = [{transform_indices = @transform_0, window_bounds = array<i64: 1, 8, 8, 256>}, {pipeline_mode = #tpu.pipeline_mode<synchronous>, transform_indices = @transform_1, window_bounds = array<i64: 256, 64>}, {pipeline_mode = #tpu.pipeline_mode<synchronous>, transform_indices = @transform_2, window_bounds = array<i64: 1, 64>}, {pipeline_mode = #tpu.pipeline_mode<synchronous>, transform_indices = @transform_3, window_bounds = array<i64: 1, 64>}, {pipeline_mode = #tpu.pipeline_mode<synchronous>, transform_indices = @transform_4, window_bounds = array<i64: 9, 64, 64>}, {pipeline_mode = #tpu.pipeline_mode<synchronous>, transform_indices = @transform_5, window_bounds = array<i64: 1, 64>}, {pipeline_mode = #tpu.pipeline_mode<synchronous>, transform_indices = @transform_6, window_bounds = array<i64: 1, 64>}, {pipeline_mode = #tpu.pipeline_mode<synchronous>, transform_indices = @transform_7, window_bounds = array<i64: 64, 256>}, {pipeline_mode = #tpu.pipeline_mode<synchronous>, transform_indices = @transform_8, window_bounds = array<i64: 1, 256>}, {pipeline_mode = #tpu.pipeline_mode<synchronous>, transform_indices = @transform_9, window_bounds = array<i64: 1, 256>}, {transform_indices = @transform_10, window_bounds = array<i64: 1, 8, 8, 256>}]} {
    %c0 = arith.constant 0 : index
    %c0_0 = arith.constant 0 : index
    %c0_1 = arith.constant 0 : index
    %c0_2 = arith.constant 0 : index
    %0 = vector.load %arg1[%c0, %c0_0, %c0_1, %c0_2] : memref<1x8x8x256xbf16, #tpu.memory_space<vmem>>, vector<1x8x8x256xbf16>
    %1 = vector.shape_cast %0 : vector<1x8x8x256xbf16> to vector<8x8x256xbf16>
    %2 = vector.shape_cast %1 : vector<8x8x256xbf16> to vector<64x256xbf16>
    %c0_3 = arith.constant 0 : index
    %c0_4 = arith.constant 0 : index
    %3 = vector.load %arg2[%c0_3, %c0_4] : memref<256x64xbf16, #tpu.memory_space<vmem>>, vector<256x64xbf16>
    %cst = arith.constant dense<0.000000e+00> : vector<64x64xf32>
    %4 = tpu.matmul %2, %3, %cst {dimension_numbers = #tpu.dot_dimension_numbers<[1], [0], [0], [1], [0, 0, 1, 1], [], []>} : vector<64x256xbf16>, vector<256x64xbf16>, vector<64x64xf32> -> vector<64x64xf32>
    %c0_5 = arith.constant 0 : index
    %c0_6 = arith.constant 0 : index
    %5 = vector.load %arg3[%c0_5, %c0_6] : memref<1x64xf32, #tpu.memory_space<vmem>>, vector<1x64xf32>
    %6 = vector.broadcast %5 : vector<1x64xf32> to vector<64x64xf32>
    %7 = arith.mulf %4, %6 : vector<64x64xf32>
    %c0_7 = arith.constant 0 : index
    %c0_8 = arith.constant 0 : index
    %8 = vector.load %arg4[%c0_7, %c0_8] : memref<1x64xf32, #tpu.memory_space<vmem>>, vector<1x64xf32>
    %9 = vector.broadcast %8 : vector<1x64xf32> to vector<64x64xf32>
    %10 = arith.addf %7, %9 : vector<64x64xf32>
    %cst_9 = arith.constant 0.000000e+00 : f32
    %11 = vector.broadcast %cst_9 : f32 to vector<64x64xf32>
    %12 = arith.maximumf %10, %11 : vector<64x64xf32>
    %13 = arith.truncf %12 : vector<64x64xf32> to vector<64x64xbf16>
    %cst_10 = arith.constant 0.000000e+00 : bf16
    %14 = vector.broadcast %cst_10 : bf16 to vector<10x10x64xbf16>
    %c0_11 = arith.constant 0 : index
    %c0_12 = arith.constant 0 : index
    %c0_13 = arith.constant 0 : index
    %15 = vector.load %arg12[%c0_11, %c0_12, %c0_13] : memref<10x10x64xbf16, #tpu.memory_space<vmem>>, vector<10x10x64xbf16>
    tpu.vector_store %arg12[%c0_11, %c0_12, %c0_13], %14 {strides = array<i32>} : memref<10x10x64xbf16, #tpu.memory_space<vmem>>, vector<10x10x64xbf16>,
    %16 = vector.shape_cast %13 : vector<64x64xbf16> to vector<8x8x64xbf16>
    %c1 = arith.constant 1 : index
    %c1_14 = arith.constant 1 : index
    %c0_15 = arith.constant 0 : index
    %17 = vector.load %arg12[%c1, %c1_14, %c0_15] : memref<10x10x64xbf16, #tpu.memory_space<vmem>>, vector<8x8x64xbf16>
    tpu.vector_store %arg12[%c1, %c1_14, %c0_15], %16 {strides = array<i32>} : memref<10x10x64xbf16, #tpu.memory_space<vmem>>, vector<8x8x64xbf16>,
    %c0_16 = arith.constant 0 : index
    %c0_17 = arith.constant 0 : index
    %c0_18 = arith.constant 0 : index
    %18 = vector.load %arg12[%c0_16, %c0_17, %c0_18] : memref<10x10x64xbf16, #tpu.memory_space<vmem>>, vector<10x10x64xbf16>
    %cst_19 = arith.constant 0.000000e+00 : f32
    %19 = vector.broadcast %cst_19 : f32 to vector<64x64xf32>
    %20 = vector.extract_strided_slice %18 {offsets = [0, 0, 0], sizes = [10, 8, 64], strides = [1, 1, 1]} : vector<10x10x64xbf16> to vector<10x8x64xbf16>
    %21 = vector.extract_strided_slice %20 {offsets = [0, 0, 0], sizes = [8, 8, 64], strides = [1, 1, 1]} : vector<10x8x64xbf16> to vector<8x8x64xbf16>
    %22 = vector.shape_cast %21 : vector<8x8x64xbf16> to vector<64x64xbf16>
    %c0_20 = arith.constant 0 : index
    %c0_21 = arith.constant 0 : index
    %c0_22 = arith.constant 0 : index
    %23 = vector.load %arg5[%c0_20, %c0_21, %c0_22] : memref<9x64x64xbf16, #tpu.memory_space<vmem>>, vector<1x64x64xbf16>
    %24 = vector.shape_cast %23 : vector<1x64x64xbf16> to vector<64x64xbf16>
    %cst_23 = arith.constant dense<0.000000e+00> : vector<64x64xf32>
    %25 = tpu.matmul %22, %24, %cst_23 {dimension_numbers = #tpu.dot_dimension_numbers<[1], [0], [0], [1], [0, 0, 1, 1], [], []>} : vector<64x64xbf16>, vector<64x64xbf16>, vector<64x64xf32> -> vector<64x64xf32>
    %26 = arith.addf %19, %25 : vector<64x64xf32>
    %27 = vector.extract_strided_slice %20 {offsets = [1, 0, 0], sizes = [8, 8, 64], strides = [1, 1, 1]} : vector<10x8x64xbf16> to vector<8x8x64xbf16>
    %28 = vector.shape_cast %27 : vector<8x8x64xbf16> to vector<64x64xbf16>
    %c3 = arith.constant 3 : index
    %c0_24 = arith.constant 0 : index
    %c0_25 = arith.constant 0 : index
    %29 = vector.load %arg5[%c3, %c0_24, %c0_25] : memref<9x64x64xbf16, #tpu.memory_space<vmem>>, vector<1x64x64xbf16>
    %30 = vector.shape_cast %29 : vector<1x64x64xbf16> to vector<64x64xbf16>
    %cst_26 = arith.constant dense<0.000000e+00> : vector<64x64xf32>
    %31 = tpu.matmul %28, %30, %cst_26 {dimension_numbers = #tpu.dot_dimension_numbers<[1], [0], [0], [1], [0, 0, 1, 1], [], []>} : vector<64x64xbf16>, vector<64x64xbf16>, vector<64x64xf32> -> vector<64x64xf32>
    %32 = arith.addf %26, %31 : vector<64x64xf32>
    %33 = vector.extract_strided_slice %20 {offsets = [2, 0, 0], sizes = [8, 8, 64], strides = [1, 1, 1]} : vector<10x8x64xbf16> to vector<8x8x64xbf16>
    %34 = vector.shape_cast %33 : vector<8x8x64xbf16> to vector<64x64xbf16>
    %c6 = arith.constant 6 : index
    %c0_27 = arith.constant 0 : index
    %c0_28 = arith.constant 0 : index
    %35 = vector.load %arg5[%c6, %c0_27, %c0_28] : memref<9x64x64xbf16, #tpu.memory_space<vmem>>, vector<1x64x64xbf16>
    %36 = vector.shape_cast %35 : vector<1x64x64xbf16> to vector<64x64xbf16>
    %cst_29 = arith.constant dense<0.000000e+00> : vector<64x64xf32>
    %37 = tpu.matmul %34, %36, %cst_29 {dimension_numbers = #tpu.dot_dimension_numbers<[1], [0], [0], [1], [0, 0, 1, 1], [], []>} : vector<64x64xbf16>, vector<64x64xbf16>, vector<64x64xf32> -> vector<64x64xf32>
    %38 = arith.addf %32, %37 : vector<64x64xf32>
    %39 = vector.extract_strided_slice %18 {offsets = [0, 1, 0], sizes = [10, 8, 64], strides = [1, 1, 1]} : vector<10x10x64xbf16> to vector<10x8x64xbf16>
    %40 = vector.extract_strided_slice %39 {offsets = [0, 0, 0], sizes = [8, 8, 64], strides = [1, 1, 1]} : vector<10x8x64xbf16> to vector<8x8x64xbf16>
    %41 = vector.shape_cast %40 : vector<8x8x64xbf16> to vector<64x64xbf16>
    %c1_30 = arith.constant 1 : index
    %c0_31 = arith.constant 0 : index
    %c0_32 = arith.constant 0 : index
    %42 = vector.load %arg5[%c1_30, %c0_31, %c0_32] : memref<9x64x64xbf16, #tpu.memory_space<vmem>>, vector<1x64x64xbf16>
    %43 = vector.shape_cast %42 : vector<1x64x64xbf16> to vector<64x64xbf16>
    %cst_33 = arith.constant dense<0.000000e+00> : vector<64x64xf32>
    %44 = tpu.matmul %41, %43, %cst_33 {dimension_numbers = #tpu.dot_dimension_numbers<[1], [0], [0], [1], [0, 0, 1, 1], [], []>} : vector<64x64xbf16>, vector<64x64xbf16>, vector<64x64xf32> -> vector<64x64xf32>
    %45 = arith.addf %38, %44 : vector<64x64xf32>
    %46 = vector.extract_strided_slice %39 {offsets = [1, 0, 0], sizes = [8, 8, 64], strides = [1, 1, 1]} : vector<10x8x64xbf16> to vector<8x8x64xbf16>
    %47 = vector.shape_cast %46 : vector<8x8x64xbf16> to vector<64x64xbf16>
    %c4 = arith.constant 4 : index
    %c0_34 = arith.constant 0 : index
    %c0_35 = arith.constant 0 : index
    %48 = vector.load %arg5[%c4, %c0_34, %c0_35] : memref<9x64x64xbf16, #tpu.memory_space<vmem>>, vector<1x64x64xbf16>
    %49 = vector.shape_cast %48 : vector<1x64x64xbf16> to vector<64x64xbf16>
    %cst_36 = arith.constant dense<0.000000e+00> : vector<64x64xf32>
    %50 = tpu.matmul %47, %49, %cst_36 {dimension_numbers = #tpu.dot_dimension_numbers<[1], [0], [0], [1], [0, 0, 1, 1], [], []>} : vector<64x64xbf16>, vector<64x64xbf16>, vector<64x64xf32> -> vector<64x64xf32>
    %51 = arith.addf %45, %50 : vector<64x64xf32>
    %52 = vector.extract_strided_slice %39 {offsets = [2, 0, 0], sizes = [8, 8, 64], strides = [1, 1, 1]} : vector<10x8x64xbf16> to vector<8x8x64xbf16>
    %53 = vector.shape_cast %52 : vector<8x8x64xbf16> to vector<64x64xbf16>
    %c7 = arith.constant 7 : index
    %c0_37 = arith.constant 0 : index
    %c0_38 = arith.constant 0 : index
    %54 = vector.load %arg5[%c7, %c0_37, %c0_38] : memref<9x64x64xbf16, #tpu.memory_space<vmem>>, vector<1x64x64xbf16>
    %55 = vector.shape_cast %54 : vector<1x64x64xbf16> to vector<64x64xbf16>
    %cst_39 = arith.constant dense<0.000000e+00> : vector<64x64xf32>
    %56 = tpu.matmul %53, %55, %cst_39 {dimension_numbers = #tpu.dot_dimension_numbers<[1], [0], [0], [1], [0, 0, 1, 1], [], []>} : vector<64x64xbf16>, vector<64x64xbf16>, vector<64x64xf32> -> vector<64x64xf32>
    %57 = arith.addf %51, %56 : vector<64x64xf32>
    %58 = vector.extract_strided_slice %18 {offsets = [0, 2, 0], sizes = [10, 8, 64], strides = [1, 1, 1]} : vector<10x10x64xbf16> to vector<10x8x64xbf16>
    %59 = vector.extract_strided_slice %58 {offsets = [0, 0, 0], sizes = [8, 8, 64], strides = [1, 1, 1]} : vector<10x8x64xbf16> to vector<8x8x64xbf16>
    %60 = vector.shape_cast %59 : vector<8x8x64xbf16> to vector<64x64xbf16>
    %c2 = arith.constant 2 : index
    %c0_40 = arith.constant 0 : index
    %c0_41 = arith.constant 0 : index
    %61 = vector.load %arg5[%c2, %c0_40, %c0_41] : memref<9x64x64xbf16, #tpu.memory_space<vmem>>, vector<1x64x64xbf16>
    %62 = vector.shape_cast %61 : vector<1x64x64xbf16> to vector<64x64xbf16>
    %cst_42 = arith.constant dense<0.000000e+00> : vector<64x64xf32>
    %63 = tpu.matmul %60, %62, %cst_42 {dimension_numbers = #tpu.dot_dimension_numbers<[1], [0], [0], [1], [0, 0, 1, 1], [], []>} : vector<64x64xbf16>, vector<64x64xbf16>, vector<64x64xf32> -> vector<64x64xf32>
    %64 = arith.addf %57, %63 : vector<64x64xf32>
    %65 = vector.extract_strided_slice %58 {offsets = [1, 0, 0], sizes = [8, 8, 64], strides = [1, 1, 1]} : vector<10x8x64xbf16> to vector<8x8x64xbf16>
    %66 = vector.shape_cast %65 : vector<8x8x64xbf16> to vector<64x64xbf16>
    %c5 = arith.constant 5 : index
    %c0_43 = arith.constant 0 : index
    %c0_44 = arith.constant 0 : index
    %67 = vector.load %arg5[%c5, %c0_43, %c0_44] : memref<9x64x64xbf16, #tpu.memory_space<vmem>>, vector<1x64x64xbf16>
    %68 = vector.shape_cast %67 : vector<1x64x64xbf16> to vector<64x64xbf16>
    %cst_45 = arith.constant dense<0.000000e+00> : vector<64x64xf32>
    %69 = tpu.matmul %66, %68, %cst_45 {dimension_numbers = #tpu.dot_dimension_numbers<[1], [0], [0], [1], [0, 0, 1, 1], [], []>} : vector<64x64xbf16>, vector<64x64xbf16>, vector<64x64xf32> -> vector<64x64xf32>
    %70 = arith.addf %64, %69 : vector<64x64xf32>
    %71 = vector.extract_strided_slice %58 {offsets = [2, 0, 0], sizes = [8, 8, 64], strides = [1, 1, 1]} : vector<10x8x64xbf16> to vector<8x8x64xbf16>
    %72 = vector.shape_cast %71 : vector<8x8x64xbf16> to vector<64x64xbf16>
    %c8 = arith.constant 8 : index
    %c0_46 = arith.constant 0 : index
    %c0_47 = arith.constant 0 : index
    %73 = vector.load %arg5[%c8, %c0_46, %c0_47] : memref<9x64x64xbf16, #tpu.memory_space<vmem>>, vector<1x64x64xbf16>
    %74 = vector.shape_cast %73 : vector<1x64x64xbf16> to vector<64x64xbf16>
    %cst_48 = arith.constant dense<0.000000e+00> : vector<64x64xf32>
    %75 = tpu.matmul %72, %74, %cst_48 {dimension_numbers = #tpu.dot_dimension_numbers<[1], [0], [0], [1], [0, 0, 1, 1], [], []>} : vector<64x64xbf16>, vector<64x64xbf16>, vector<64x64xf32> -> vector<64x64xf32>
    %76 = arith.addf %70, %75 : vector<64x64xf32>
    %c0_49 = arith.constant 0 : index
    %c0_50 = arith.constant 0 : index
    %77 = vector.load %arg6[%c0_49, %c0_50] : memref<1x64xf32, #tpu.memory_space<vmem>>, vector<1x64xf32>
    %78 = vector.broadcast %77 : vector<1x64xf32> to vector<64x64xf32>
    %79 = arith.mulf %76, %78 : vector<64x64xf32>
    %c0_51 = arith.constant 0 : index
    %c0_52 = arith.constant 0 : index
    %80 = vector.load %arg7[%c0_51, %c0_52] : memref<1x64xf32, #tpu.memory_space<vmem>>, vector<1x64xf32>
    %81 = vector.broadcast %80 : vector<1x64xf32> to vector<64x64xf32>
    %82 = arith.addf %79, %81 : vector<64x64xf32>
    %cst_53 = arith.constant 0.000000e+00 : f32
    %83 = vector.broadcast %cst_53 : f32 to vector<64x64xf32>
    %84 = arith.maximumf %82, %83 : vector<64x64xf32>
    %85 = arith.truncf %84 : vector<64x64xf32> to vector<64x64xbf16>
    %c0_54 = arith.constant 0 : index
    %c0_55 = arith.constant 0 : index
    %86 = vector.load %arg8[%c0_54, %c0_55] : memref<64x256xbf16, #tpu.memory_space<vmem>>, vector<64x256xbf16>
    %cst_56 = arith.constant dense<0.000000e+00> : vector<64x256xf32>
    %87 = tpu.matmul %85, %86, %cst_56 {dimension_numbers = #tpu.dot_dimension_numbers<[1], [0], [0], [1], [0, 0, 1, 1], [], []>} : vector<64x64xbf16>, vector<64x256xbf16>, vector<64x256xf32> -> vector<64x256xf32>
    %c0_57 = arith.constant 0 : index
    %c0_58 = arith.constant 0 : index
    %88 = vector.load %arg9[%c0_57, %c0_58] : memref<1x256xf32, #tpu.memory_space<vmem>>, vector<1x256xf32>
    %89 = vector.broadcast %88 : vector<1x256xf32> to vector<64x256xf32>
    %90 = arith.mulf %87, %89 : vector<64x256xf32>
    %c0_59 = arith.constant 0 : index
    %c0_60 = arith.constant 0 : index
    %91 = vector.load %arg10[%c0_59, %c0_60] : memref<1x256xf32, #tpu.memory_space<vmem>>, vector<1x256xf32>
    %92 = vector.broadcast %91 : vector<1x256xf32> to vector<64x256xf32>
    %93 = arith.addf %90, %92 : vector<64x256xf32>
    %94 = arith.extf %2 : vector<64x256xbf16> to vector<64x256xf32>
    %95 = arith.addf %93, %94 : vector<64x256xf32>
    %cst_61 = arith.constant 0.000000e+00 : f32
    %96 = vector.broadcast %cst_61 : f32 to vector<64x256xf32>
    %97 = arith.maximumf %95, %96 : vector<64x256xf32>
    %98 = vector.shape_cast %97 : vector<64x256xf32> to vector<8x8x256xf32>
    %99 = arith.truncf %98 : vector<8x8x256xf32> to vector<8x8x256xbf16>
    %c0_62 = arith.constant 0 : index
    %c0_63 = arith.constant 0 : index
    %c0_64 = arith.constant 0 : index
    %c0_65 = arith.constant 0 : index
    %100 = vector.load %arg11[%c0_62, %c0_63, %c0_64, %c0_65] : memref<1x8x8x256xbf16, #tpu.memory_space<vmem>>, vector<1x8x8x256xbf16>
    %101 = vector.shape_cast %100 : vector<1x8x8x256xbf16> to vector<8x8x256xbf16>
    %102 = vector.shape_cast %99 : vector<8x8x256xbf16> to vector<1x8x8x256xbf16>
    tpu.vector_store %arg11[%c0_62, %c0_63, %c0_64, %c0_65], %102 {strides = array<i32>} : memref<1x8x8x256xbf16, #tpu.memory_space<vmem>>, vector<1x8x8x256xbf16>,
    return
  }
  func.func @transform_0(%arg0: i32) -> (i32, i32, i32, i32) {
    %c0_i32 = arith.constant 0 : i32
    %c0_i32_0 = arith.constant 0 : i32
    %c0_i32_1 = arith.constant 0 : i32
    %c0_i32_2 = arith.constant 0 : i32
    return %arg0, %c0_i32, %c0_i32_0, %c0_i32_1 : i32, i32, i32, i32
  }
  func.func @transform_1(%arg0: i32) -> (i32, i32) {
    %c0_i32 = arith.constant 0 : i32
    %c0_i32_0 = arith.constant 0 : i32
    %c0_i32_1 = arith.constant 0 : i32
    return %c0_i32, %c0_i32_0 : i32, i32
  }
  func.func @transform_2(%arg0: i32) -> (i32, i32) {
    %c0_i32 = arith.constant 0 : i32
    %c0_i32_0 = arith.constant 0 : i32
    %c0_i32_1 = arith.constant 0 : i32
    return %c0_i32, %c0_i32_0 : i32, i32
  }
  func.func @transform_3(%arg0: i32) -> (i32, i32) {
    %c0_i32 = arith.constant 0 : i32
    %c0_i32_0 = arith.constant 0 : i32
    %c0_i32_1 = arith.constant 0 : i32
    return %c0_i32, %c0_i32_0 : i32, i32
  }
  func.func @transform_4(%arg0: i32) -> (i32, i32, i32) {
    %c0_i32 = arith.constant 0 : i32
    %c0_i32_0 = arith.constant 0 : i32
    %c0_i32_1 = arith.constant 0 : i32
    %c0_i32_2 = arith.constant 0 : i32
    return %c0_i32, %c0_i32_0, %c0_i32_1 : i32, i32, i32
  }
  func.func @transform_5(%arg0: i32) -> (i32, i32) {
    %c0_i32 = arith.constant 0 : i32
    %c0_i32_0 = arith.constant 0 : i32
    %c0_i32_1 = arith.constant 0 : i32
    return %c0_i32, %c0_i32_0 : i32, i32
  }
  func.func @transform_6(%arg0: i32) -> (i32, i32) {
    %c0_i32 = arith.constant 0 : i32
    %c0_i32_0 = arith.constant 0 : i32
    %c0_i32_1 = arith.constant 0 : i32
    return %c0_i32, %c0_i32_0 : i32, i32
  }
  func.func @transform_7(%arg0: i32) -> (i32, i32) {
    %c0_i32 = arith.constant 0 : i32
    %c0_i32_0 = arith.constant 0 : i32
    %c0_i32_1 = arith.constant 0 : i32
    return %c0_i32, %c0_i32_0 : i32, i32
  }
  func.func @transform_8(%arg0: i32) -> (i32, i32) {
    %c0_i32 = arith.constant 0 : i32
    %c0_i32_0 = arith.constant 0 : i32
    %c0_i32_1 = arith.constant 0 : i32
    return %c0_i32, %c0_i32_0 : i32, i32
  }
  func.func @transform_9(%arg0: i32) -> (i32, i32) {
    %c0_i32 = arith.constant 0 : i32
    %c0_i32_0 = arith.constant 0 : i32
    %c0_i32_1 = arith.constant 0 : i32
    return %c0_i32, %c0_i32_0 : i32, i32
  }
  func.func @transform_10(%arg0: i32) -> (i32, i32, i32, i32) {
    %c0_i32 = arith.constant 0 : i32
    %c0_i32_0 = arith.constant 0 : i32
    %c0_i32_1 = arith.constant 0 : i32
    %c0_i32_2 = arith.constant 0 : i32
    return %arg0, %c0_i32, %c0_i32_0, %c0_i32_1 : i32, i32, i32, i32
  }
}

</mosaic_0001>

<llo_original>
// kernel: bottleneck_forward.1
$region0: #{bottleneck_forward.1}
  #allocation0 [shape = 'u32[]', space=smem, size = 0x4, offset = 0x4, fixed_abs, tag = 'smem constant byte address 0x4 - core index']
  #allocation1 [shape = 'u32[144,128]{1,0:T(1,128)}', space=vmem, size = 0x12000, scoped, tag = 'internal scratch']
  #allocation2 [shape = 'bf16[10,10,64]{2,1,0:T(8,128)(2,1)}', space=vmem, size = 0xa000, scoped, tag = 'scratch operand']
  %s0 = inlined_call_operand.vmem [shape: bf16[2,8,8,256], index: 0, kind: input, shape index: {}]
  %s1 = inlined_call_operand.vmem [shape: bf16[256,64], index: 1, kind: input, shape index: {}]
  %s2 = inlined_call_operand.vmem [shape: f32[1,64], index: 2, kind: input, shape index: {}]
  %s3 = inlined_call_operand.vmem [shape: f32[1,64], index: 3, kind: input, shape index: {}]
  %s4 = inlined_call_operand.vmem [shape: bf16[9,64,64], index: 4, kind: input, shape index: {}]
  %s5 = inlined_call_operand.vmem [shape: f32[1,64], index: 5, kind: input, shape index: {}]
  %s6 = inlined_call_operand.vmem [shape: f32[1,64], index: 6, kind: input, shape index: {}]
  %s7 = inlined_call_operand.vmem [shape: bf16[64,256], index: 7, kind: input, shape index: {}]
  %s8 = inlined_call_operand.vmem [shape: f32[1,256], index: 8, kind: input, shape index: {}]
  %s9 = inlined_call_operand.vmem [shape: f32[1,256], index: 9, kind: input, shape index: {}]
  %s10 = inlined_call_operand.hbm [shape: bf16[2,8,8,256], index: 10, kind: output, shape index: {}]
  %s11 = sld [smem:[#allocation0]]
  $region73: #{bottleneck_forward.1} parent=0
    _
  %s13 = ssub.s32 1, %s11
  %s14 = scalar_select 0, %s13, %s11
  $region1: #{bottleneck_forward.1} parent=0
    #allocation3 [shape = 'u8[65536]{0}', space=vmem, size = 0x10000, scoped, tag = 'output window, operand 0']
    #allocation4 [shape = 's32[2]{0}', space=sflag, size = 0x8, scoped, tag = 'scoped memory for bottleneck_forward.1']
    %15 = vsyncpa [#allocation4], 0
    %s16 = scalar_lea.sflag [#allocation4], 1
    %17 = vsyncpa %s16, 0
    loop: start=0, step=1, limit=4
    $region2: #{bottleneck_forward.1} parent=1 // loop_pre_header
      _
    $region3: #{bottleneck_forward.1} parent=1 // loop_header
      %s19 = sphi 0, %s23
      %p20 = scmp.ge.s32.totalorder %s19, 4
      %s29 = sphi 0, %s31
      %s32 = sphi 0, %s29
      %s33 = sphi 0, %s32
      %s49 = sphi 0, %s33
      %s53 = sphi 0, %s53
      %s55 = sphi 0, %s53
      %s56 = sphi 0, %s55
      %s70 = sphi 0, %s56
      %s74 = sphi 0, %s74
      %s76 = sphi 0, %s74
      %s77 = sphi 0, %s76
      %s91 = sphi 0, %s77
      %s95 = sphi 0, %s95
      %s97 = sphi 0, %s95
      %s98 = sphi 0, %s97
      %s112 = sphi 0, %s98
      %s116 = sphi 0, %s116
      %s118 = sphi 0, %s116
      %s119 = sphi 0, %s118
      %s133 = sphi 0, %s119
      %s137 = sphi 0, %s137
      %s139 = sphi 0, %s137
      %s140 = sphi 0, %s139
      %s154 = sphi 0, %s140
      %s158 = sphi 0, %s158
      %s160 = sphi 0, %s158
      %s161 = sphi 0, %s160
      %s175 = sphi 0, %s161
      %s179 = sphi 0, %s179
      %s181 = sphi 0, %s179
      %s182 = sphi 0, %s181
      %s196 = sphi 0, %s182
      %s200 = sphi 0, %s200
      %s202 = sphi 0, %s200
      %s203 = sphi 0, %s202
      %s217 = sphi 0, %s203
      %s221 = sphi 0, %s221
      %s223 = sphi 0, %s221
      %s224 = sphi 0, %s223
      %s238 = sphi 0, %s224
      %s244 = sphi 0, %s246
      %s247 = sphi 0, %s244
      %s248 = sphi 0, %s247
      %s264 = sphi 0, %s248
    $region4: #{bottleneck_forward.1} parent=1 // loop_header_branch
      %22 = sbr.rel (%p20) target = $region8
    $region5: #{bottleneck_forward.1} parent=1 // loop_body
      %s24 = ssub.s32 %s19, 1
      %s25 = ssub.s32 %s19, 2
      %s26 = sadd.s32 %s19, 1
      %s27 = ssub.s32 %s19, %s26
      %p28 = scmp.eq.s32.totalorder %s27, 0
      %s30 = sadd.s32 %s29, 1
      %s31 = scalar_select %p28, %s29, %s30
      %p34 = pneg %p28
      %p35 = scmp.eq.s32.totalorder %s19, 1
      %p36 = por %p34, %p35
      %p37 = scmp.ne.s32.totalorder %s29, %s32
      %p38 = scmp.eq.s32.totalorder %s19, 0
      %p39 = por %p37, %p38
      %p40 = scmp.ne.s32.totalorder %s29, %s32
      %p41 = scmp.eq.s32.totalorder %s24, 1
      %p42 = por %p40, %p41
      %p43 = scmp.ne.s32.totalorder %s32, %s33
      %p44 = scmp.eq.s32.totalorder %s24, 0
      %p45 = por %p43, %p44
      %p46 = scmp.ne.s32.totalorder %s32, %s33
      %p47 = scmp.eq.s32.totalorder %s25, 1
      %p48 = por %p46, %p47
      %p50 = scmp.ne.s32.totalorder %s33, %s49
      %p51 = scmp.eq.s32.totalorder %s25, 0
      %p52 = por %p50, %p51
      %s54 = sadd.s32 %s53, 1
      %p57 = scmp.eq.s32.totalorder %s19, 1
      %p58 = scmp.ne.s32.totalorder %s53, %s55
      %p59 = scmp.eq.s32.totalorder %s19, 0
      %p60 = por %p58, %p59
      %p61 = scmp.ne.s32.totalorder %s53, %s55
      %p62 = scmp.eq.s32.totalorder %s24, 1
      %p63 = por %p61, %p62
      %p64 = scmp.ne.s32.totalorder %s55, %s56
      %p65 = scmp.eq.s32.totalorder %s24, 0
      %p66 = por %p64, %p65
      %p67 = scmp.ne.s32.totalorder %s55, %s56
      %p68 = scmp.eq.s32.totalorder %s25, 1
      %p69 = por %p67, %p68
      %p71 = scmp.ne.s32.totalorder %s56, %s70
      %p72 = scmp.eq.s32.totalorder %s25, 0
      %p73 = por %p71, %p72
      %s75 = sadd.s32 %s74, 1
      %p78 = scmp.eq.s32.totalorder %s19, 1
      %p79 = scmp.ne.s32.totalorder %s74, %s76
      %p80 = scmp.eq.s32.totalorder %s19, 0
      %p81 = por %p79, %p80
      %p82 = scmp.ne.s32.totalorder %s74, %s76
      %p83 = scmp.eq.s32.totalorder %s24, 1
      %p84 = por %p82, %p83
      %p85 = scmp.ne.s32.totalorder %s76, %s77
      %p86 = scmp.eq.s32.totalorder %s24, 0
      %p87 = por %p85, %p86
      %p88 = scmp.ne.s32.totalorder %s76, %s77
      %p89 = scmp.eq.s32.totalorder %s25, 1
      %p90 = por %p88, %p89
      %p92 = scmp.ne.s32.totalorder %s77, %s91
      %p93 = scmp.eq.s32.totalorder %s25, 0
      %p94 = por %p92, %p93
      %s96 = sadd.s32 %s95, 1
      %p99 = scmp.eq.s32.totalorder %s19, 1
      %p100 = scmp.ne.s32.totalorder %s95, %s97
      %p101 = scmp.eq.s32.totalorder %s19, 0
      %p102 = por %p100, %p101
      %p103 = scmp.ne.s32.totalorder %s95, %s97
      %p104 = scmp.eq.s32.totalorder %s24, 1
      %p105 = por %p103, %p104
      %p106 = scmp.ne.s32.totalorder %s97, %s98
      %p107 = scmp.eq.s32.totalorder %s24, 0
      %p108 = por %p106, %p107
      %p109 = scmp.ne.s32.totalorder %s97, %s98
      %p110 = scmp.eq.s32.totalorder %s25, 1
      %p111 = por %p109, %p110
      %p113 = scmp.ne.s32.totalorder %s98, %s112
      %p114 = scmp.eq.s32.totalorder %s25, 0
      %p115 = por %p113, %p114
      %s117 = sadd.s32 %s116, 1
      %p120 = scmp.eq.s32.totalorder %s19, 1
      %p121 = scmp.ne.s32.totalorder %s116, %s118
      %p122 = scmp.eq.s32.totalorder %s19, 0
      %p123 = por %p121, %p122
      %p124 = scmp.ne.s32.totalorder %s116, %s118
      %p125 = scmp.eq.s32.totalorder %s24, 1
      %p126 = por %p124, %p125
      %p127 = scmp.ne.s32.totalorder %s118, %s119
      %p128 = scmp.eq.s32.totalorder %s24, 0
      %p129 = por %p127, %p128
      %p130 = scmp.ne.s32.totalorder %s118, %s119
      %p131 = scmp.eq.s32.totalorder %s25, 1
      %p132 = por %p130, %p131
      %p134 = scmp.ne.s32.totalorder %s119, %s133
      %p135 = scmp.eq.s32.totalorder %s25, 0
      %p136 = por %p134, %p135
      %s138 = sadd.s32 %s137, 1
      %p141 = scmp.eq.s32.totalorder %s19, 1
      %p142 = scmp.ne.s32.totalorder %s137, %s139
      %p143 = scmp.eq.s32.totalorder %s19, 0
      %p144 = por %p142, %p143
      %p145 = scmp.ne.s32.totalorder %s137, %s139
      %p146 = scmp.eq.s32.totalorder %s24, 1
      %p147 = por %p145, %p146
      %p148 = scmp.ne.s32.totalorder %s139, %s140
      %p149 = scmp.eq.s32.totalorder %s24, 0
      %p150 = por %p148, %p149
      %p151 = scmp.ne.s32.totalorder %s139, %s140
      %p152 = scmp.eq.s32.totalorder %s25, 1
      %p153 = por %p151, %p152
      %p155 = scmp.ne.s32.totalorder %s140, %s154
      %p156 = scmp.eq.s32.totalorder %s25, 0
      %p157 = por %p155, %p156
      %s159 = sadd.s32 %s158, 1
      %p162 = scmp.eq.s32.totalorder %s19, 1
      %p163 = scmp.ne.s32.totalorder %s158, %s160
      %p164 = scmp.eq.s32.totalorder %s19, 0
      %p165 = por %p163, %p164
      %p166 = scmp.ne.s32.totalorder %s158, %s160
      %p167 = scmp.eq.s32.totalorder %s24, 1
      %p168 = por %p166, %p167
      %p169 = scmp.ne.s32.totalorder %s160, %s161
      %p170 = scmp.eq.s32.totalorder %s24, 0
      %p171 = por %p169, %p170
      %p172 = scmp.ne.s32.totalorder %s160, %s161
      %p173 = scmp.eq.s32.totalorder %s25, 1
      %p174 = por %p172, %p173
      %p176 = scmp.ne.s32.totalorder %s161, %s175
      %p177 = scmp.eq.s32.totalorder %s25, 0
      %p178 = por %p176, %p177
      %s180 = sadd.s32 %s179, 1
      %p183 = scmp.eq.s32.totalorder %s19, 1
      %p184 = scmp.ne.s32.totalorder %s179, %s181
      %p185 = scmp.eq.s32.totalorder %s19, 0
      %p186 = por %p184, %p185
      %p187 = scmp.ne.s32.totalorder %s179, %s181
      %p188 = scmp.eq.s32.totalorder %s24, 1
      %p189 = por %p187, %p188
      %p190 = scmp.ne.s32.totalorder %s181, %s182
      %p191 = scmp.eq.s32.totalorder %s24, 0
      %p192 = por %p190, %p191
      %p193 = scmp.ne.s32.totalorder %s181, %s182
      %p194 = scmp.eq.s32.totalorder %s25, 1
      %p195 = por %p193, %p194
      %p197 = scmp.ne.s32.totalorder %s182, %s196
      %p198 = scmp.eq.s32.totalorder %s25, 0
      %p199 = por %p197, %p198
      %s201 = sadd.s32 %s200, 1
      %p204 = scmp.eq.s32.totalorder %s19, 1
      %p205 = scmp.ne.s32.totalorder %s200, %s202
      %p206 = scmp.eq.s32.totalorder %s19, 0
      %p207 = por %p205, %p206
      %p208 = scmp.ne.s32.totalorder %s200, %s202
      %p209 = scmp.eq.s32.totalorder %s24, 1
      %p210 = por %p208, %p209
      %p211 = scmp.ne.s32.totalorder %s202, %s203
      %p212 = scmp.eq.s32.totalorder %s24, 0
      %p213 = por %p211, %p212
      %p214 = scmp.ne.s32.totalorder %s202, %s203
      %p215 = scmp.eq.s32.totalorder %s25, 1
      %p216 = por %p214, %p215
      %p218 = scmp.ne.s32.totalorder %s203, %s217
      %p219 = scmp.eq.s32.totalorder %s25, 0
      %p220 = por %p218, %p219
      %s222 = sadd.s32 %s221, 1
      %p225 = scmp.eq.s32.totalorder %s19, 1
      %p226 = scmp.ne.s32.totalorder %s221, %s223
      %p227 = scmp.eq.s32.totalorder %s19, 0
      %p228 = por %p226, %p227
      %p229 = scmp.ne.s32.totalorder %s221, %s223
      %p230 = scmp.eq.s32.totalorder %s24, 1
      %p231 = por %p229, %p230
      %p232 = scmp.ne.s32.totalorder %s223, %s224
      %p233 = scmp.eq.s32.totalorder %s24, 0
      %p234 = por %p232, %p233
      %p235 = scmp.ne.s32.totalorder %s223, %s224
      %p236 = scmp.eq.s32.totalorder %s25, 1
      %p237 = por %p235, %p236
      %p239 = scmp.ne.s32.totalorder %s224, %s238
      %p240 = scmp.eq.s32.totalorder %s25, 0
      %p241 = por %p239, %p240
      %s242 = ssub.s32 %s19, %s26
      %p243 = scmp.eq.s32.totalorder %s242, 0
      %s245 = sadd.s32 %s244, 1
      %s246 = scalar_select %p243, %s244, %s245
      %p249 = pneg %p243
      %p250 = scmp.eq.s32.totalorder %s19, 1
      %p251 = por %p249, %p250
      %p252 = scmp.ne.s32.totalorder %s244, %s247
      %p253 = scmp.eq.s32.totalorder %s19, 0
      %p254 = por %p252, %p253
      %p255 = scmp.ne.s32.totalorder %s244, %s247
      %p256 = scmp.eq.s32.totalorder %s24, 1
      %p257 = por %p255, %p256
      %p258 = scmp.ne.s32.totalorder %s247, %s248
      %p259 = scmp.eq.s32.totalorder %s24, 0
      %p260 = por %p258, %p259
      %p261 = scmp.ne.s32.totalorder %s247, %s248
      %p262 = scmp.eq.s32.totalorder %s25, 1
      %p263 = por %p261, %p262
      %p265 = scmp.ne.s32.totalorder %s248, %s264
      %p266 = scmp.eq.s32.totalorder %s25, 0
      %p267 = por %p265, %p266
      %p268 = scmp.le.s32.totalorder 1, %s19
      %p269 = scmp.lt.s32.totalorder %s19, 3
      %p270 = pnand %p268, %p269
      %p271 = pneg %p270
      // Predicated region
      $region9: #{bottleneck_forward.1} parent=5 // pred_check
        _
      $region10: #{bottleneck_forward.1} parent=5 // pred_check_branch
        %273 = sbr.rel (%p270) target = $region12
      $region11: #{bottleneck_forward.1} parent=5 // pred_region
        %s274 = ssub.s32 %s19, 1
        // Predicated region
        $region13: #{bottleneck_forward.1} parent=11 // pred_check
          %p275 = pneg %p66
        $region14: #{bottleneck_forward.1} parent=11 // pred_check_branch
          %277 = sbr.rel (%p275) target = $region16
        $region15: #{bottleneck_forward.1} parent=11 // pred_region
          _
        $region16: #{bottleneck_forward.1} parent=11 // pred_fallthru
          _
        // Predicated region
        $region17: #{bottleneck_forward.1} parent=11 // pred_check
          %p278 = pneg %p87
        $region18: #{bottleneck_forward.1} parent=11 // pred_check_branch
          %280 = sbr.rel (%p278) target = $region20
        $region19: #{bottleneck_forward.1} parent=11 // pred_region
          _
        $region20: #{bottleneck_forward.1} parent=11 // pred_fallthru
          _
        // Predicated region
        $region21: #{bottleneck_forward.1} parent=11 // pred_check
          %p281 = pneg %p108
        $region22: #{bottleneck_forward.1} parent=11 // pred_check_branch
          %283 = sbr.rel (%p281) target = $region24
        $region23: #{bottleneck_forward.1} parent=11 // pred_region
          _
        $region24: #{bottleneck_forward.1} parent=11 // pred_fallthru
          _
        // Predicated region
        $region25: #{bottleneck_forward.1} parent=11 // pred_check
          %p284 = pneg %p129
        $region26: #{bottleneck_forward.1} parent=11 // pred_check_branch
          %286 = sbr.rel (%p284) target = $region28
        $region27: #{bottleneck_forward.1} parent=11 // pred_region
          _
        $region28: #{bottleneck_forward.1} parent=11 // pred_fallthru
          _
        // Predicated region
        $region29: #{bottleneck_forward.1} parent=11 // pred_check
          %p287 = pneg %p150
        $region30: #{bottleneck_forward.1} parent=11 // pred_check_branch
          %289 = sbr.rel (%p287) target = $region32
        $region31: #{bottleneck_forward.1} parent=11 // pred_region
          _
        $region32: #{bottleneck_forward.1} parent=11 // pred_fallthru
          _
        // Predicated region
        $region33: #{bottleneck_forward.1} parent=11 // pred_check
          %p290 = pneg %p171
        $region34: #{bottleneck_forward.1} parent=11 // pred_check_branch
          %292 = sbr.rel (%p290) target = $region36
        $region35: #{bottleneck_forward.1} parent=11 // pred_region
          _
        $region36: #{bottleneck_forward.1} parent=11 // pred_fallthru
          _
        // Predicated region
        $region37: #{bottleneck_forward.1} parent=11 // pred_check
          %p293 = pneg %p192
        $region38: #{bottleneck_forward.1} parent=11 // pred_check_branch
          %295 = sbr.rel (%p293) target = $region40
        $region39: #{bottleneck_forward.1} parent=11 // pred_region
          _
        $region40: #{bottleneck_forward.1} parent=11 // pred_fallthru
          _
        // Predicated region
        $region41: #{bottleneck_forward.1} parent=11 // pred_check
          %p296 = pneg %p213
        $region42: #{bottleneck_forward.1} parent=11 // pred_check_branch
          %298 = sbr.rel (%p296) target = $region44
        $region43: #{bottleneck_forward.1} parent=11 // pred_region
          _
        $region44: #{bottleneck_forward.1} parent=11 // pred_fallthru
          _
        // Predicated region
        $region45: #{bottleneck_forward.1} parent=11 // pred_check
          %p299 = pneg %p234
        $region46: #{bottleneck_forward.1} parent=11 // pred_check_branch
          %301 = sbr.rel (%p299) target = $region48
        $region47: #{bottleneck_forward.1} parent=11 // pred_region
          _
        $region48: #{bottleneck_forward.1} parent=11 // pred_fallthru
          _
      $region12: #{bottleneck_forward.1} parent=5 // pred_fallthru
        _
      %p302 = scmp.lt.s32.totalorder %s19, 2
      // Predicated region
      $region49: #{bottleneck_forward.1} parent=5 // pred_check
        %p303 = pneg %p302
      $region50: #{bottleneck_forward.1} parent=5 // pred_check_branch
        %305 = sbr.rel (%p303) target = $region52
      $region51: #{bottleneck_forward.1} parent=5 // pred_region
        // Predicated region
        $region53: #{bottleneck_forward.1} parent=51 // pred_check
          %p306 = pneg %p39
        $region54: #{bottleneck_forward.1} parent=51 // pred_check_branch
          %308 = sbr.rel (%p306) target = $region56
        $region55: #{bottleneck_forward.1} parent=51 // pred_region
          %p309 = scmp.lt.s32.totalorder %s19, 1
          %s310 = scalar_select %p309, %s19, 1
          %s311 = smul.addr %s310, 16
          %s312 = smul.addr %s311, 4
          %s313 = scalar_lea.vmem %s0, %s312
        $region56: #{bottleneck_forward.1} parent=51 // pred_fallthru
          _
      $region52: #{bottleneck_forward.1} parent=5 // pred_fallthru
        _
      %p314 = scmp.le.s32.totalorder 1, %s19
      %p315 = scmp.lt.s32.totalorder %s19, 3
      %p316 = pnand %p314, %p315
      %p317 = pneg %p316
      // Predicated region
      $region57: #{bottleneck_forward.1} parent=5 // pred_check
        _
      $region58: #{bottleneck_forward.1} parent=5 // pred_check_branch
        %319 = sbr.rel (%p316) target = $region60
      $region59: #{bottleneck_forward.1} parent=5 // pred_region
        %s320 = ssub.s32 %s19, 1
        %p321 = scmp.lt.s32.totalorder %s24, 1
        %s322 = scalar_select %p321, %s24, 1
        %s323 = smul.addr %s322, 16
        %s324 = smul.addr %s323, 4
        %s325 = scalar_lea.vmem %s0, %s324
        %p326 = pneg %p45
        %p327 = pneg %p42
        %p328 = pneg %p66
        %p329 = pneg %p63
        %p330 = pneg %p87
        %p331 = pneg %p84
        %p332 = pneg %p108
        %p333 = pneg %p105
        %p334 = pneg %p129
        %p335 = pneg %p126
        %p336 = pneg %p150
        %p337 = pneg %p147
        %p338 = pneg %p171
        %p339 = pneg %p168
        %p340 = pneg %p192
        %p341 = pneg %p189
        %p342 = pneg %p213
        %p343 = pneg %p210
        %p344 = pneg %p234
        %p345 = pneg %p231
        %p346 = pneg %p260
        %p347 = pneg %p257
        %s348 = sand.u32 %s247, 1
        %s349 = scalar_lea.sflag [#allocation4], %s348
        %s350 = sand.u32 %s247, 1
        %s351 = smul.addr %s350, 64
        %s352 = scalar_lea.vmem [#allocation3], %s351
        %p353 = scmp.lt.s32.totalorder %s24, 1
        %s354 = scalar_select %p353, %s24, 1
        %s355 = smul.addr %s354, 16
        %s356 = smul.addr %s355, 4
        %s357 = scalar_lea.vmem %s0, %s356
        %v359 = vld [vmem:[%s357] sm:$0xff]
        %v360 = vld [vmem:[%s357 + $0x8] sm:$0xff]
        %v361 = vld [vmem:[%s357 + $0x10] sm:$0xff]
        %v362 = vld [vmem:[%s357 + $0x18] sm:$0xff]
        %v363 = vld [vmem:[%s357 + $0x20] sm:$0xff]
        %v364 = vld [vmem:[%s357 + $0x28] sm:$0xff]
        %v365 = vld [vmem:[%s357 + $0x30] sm:$0xff]
        %v366 = vld [vmem:[%s357 + $0x38] sm:$0xff]
        %v367 = vld [vmem:[%s1] sm:$0xf]
        %v368 = vld [vmem:[%s1 + $0x4] sm:$0xf]
        %v369 = vld [vmem:[%s1 + $0x8] sm:$0xf]
        %v370 = vld [vmem:[%s1 + $0xc] sm:$0xf]
        %v371 = vld [vmem:[%s1 + $0x10] sm:$0xf]
        %v372 = vld [vmem:[%s1 + $0x14] sm:$0xf]
        %v373 = vld [vmem:[%s1 + $0x18] sm:$0xf]
        %v374 = vld [vmem:[%s1 + $0x1c] sm:$0xf]
        %v375 = vld [vmem:[%s1 + $0x20] sm:$0xf]
        %v376 = vld [vmem:[%s1 + $0x24] sm:$0xf]
        %v377 = vld [vmem:[%s1 + $0x28] sm:$0xf]
        %v378 = vld [vmem:[%s1 + $0x2c] sm:$0xf]
        %v379 = vld [vmem:[%s1 + $0x30] sm:$0xf]
        %v380 = vld [vmem:[%s1 + $0x34] sm:$0xf]
        %v381 = vld [vmem:[%s1 + $0x38] sm:$0xf]
        %v382 = vld [vmem:[%s1 + $0x3c] sm:$0xf]
        %v383 = vld [vmem:[%s1 + $0x40] sm:$0xf]
        %v384 = vld [vmem:[%s1 + $0x44] sm:$0xf]
        %v385 = vld [vmem:[%s1 + $0x48] sm:$0xf]
        %v386 = vld [vmem:[%s1 + $0x4c] sm:$0xf]
        %v387 = vld [vmem:[%s1 + $0x50] sm:$0xf]
        %v388 = vld [vmem:[%s1 + $0x54] sm:$0xf]
        %v389 = vld [vmem:[%s1 + $0x58] sm:$0xf]
        %v390 = vld [vmem:[%s1 + $0x5c] sm:$0xf]
        %v391 = vld [vmem:[%s1 + $0x60] sm:$0xf]
        %v392 = vld [vmem:[%s1 + $0x64] sm:$0xf]
        %v393 = vld [vmem:[%s1 + $0x68] sm:$0xf]
        %v394 = vld [vmem:[%s1 + $0x6c] sm:$0xf]
        %v395 = vld [vmem:[%s1 + $0x70] sm:$0xf]
        %v396 = vld [vmem:[%s1 + $0x74] sm:$0xf]
        %v397 = vld [vmem:[%s1 + $0x78] sm:$0xf]
        %v398 = vld [vmem:[%s1 + $0x7c] sm:$0xf]
        %v407 = vunpack.c.l.b16 %v359
        %v408 = vunpack.c.h.b16 %v359
        %v409 = vunpack.c.l.b16 %v360
        %v410 = vunpack.c.h.b16 %v360
        %v411 = vunpack.c.l.b16 %v361
        %v412 = vunpack.c.h.b16 %v361
        %v413 = vunpack.c.l.b16 %v362
        %v414 = vunpack.c.h.b16 %v362
        %v415 = vunpack.c.l.b16 %v363
        %v416 = vunpack.c.h.b16 %v363
        %v417 = vunpack.c.l.b16 %v364
        %v418 = vunpack.c.h.b16 %v364
        %v419 = vunpack.c.l.b16 %v365
        %v420 = vunpack.c.h.b16 %v365
        %v421 = vunpack.c.l.b16 %v366
        %v422 = vunpack.c.h.b16 %v366
        %v423 = vpack.c.b16 %v409, %v407
        %v424 = vpack.c.b16 %v410, %v408
        %v425 = vpack.c.b16 %v413, %v411
        %v426 = vpack.c.b16 %v414, %v412
        %v427 = vpack.c.b16 %v417, %v415
        %v428 = vpack.c.b16 %v418, %v416
        %v429 = vpack.c.b16 %v421, %v419
        %v430 = vpack.c.b16 %v422, %v420
        %v471 = vunpack.c.l.b16 %v367
        %v472 = vunpack.c.l.b16 %v368
        %v473 = vunpack.c.l.b16 %v369
        %v474 = vunpack.c.l.b16 %v370
        %v475 = vunpack.c.l.b16 %v371
        %v476 = vunpack.c.l.b16 %v372
        %v477 = vunpack.c.l.b16 %v373
        %v478 = vunpack.c.l.b16 %v374
        %v479 = vunpack.c.l.b16 %v375
        %v480 = vunpack.c.l.b16 %v376
        %v481 = vunpack.c.l.b16 %v377
        %v482 = vunpack.c.l.b16 %v378
        %v483 = vunpack.c.l.b16 %v379
        %v484 = vunpack.c.l.b16 %v380
        %v485 = vunpack.c.l.b16 %v381
        %v486 = vunpack.c.l.b16 %v382
        %v487 = vunpack.c.l.b16 %v383
        %v488 = vunpack.c.l.b16 %v384
        %v489 = vunpack.c.l.b16 %v385
        %v490 = vunpack.c.l.b16 %v386
        %v491 = vunpack.c.l.b16 %v387
        %v492 = vunpack.c.l.b16 %v388
        %v493 = vunpack.c.l.b16 %v389
        %v494 = vunpack.c.l.b16 %v390
        %v495 = vunpack.c.l.b16 %v391
        %v496 = vunpack.c.l.b16 %v392
        %v497 = vunpack.c.l.b16 %v393
        %v498 = vunpack.c.l.b16 %v394
        %v499 = vunpack.c.l.b16 %v395
        %v500 = vunpack.c.l.b16 %v396
        %v501 = vunpack.c.l.b16 %v397
        %v502 = vunpack.c.l.b16 %v398
        %v503 = vpack.c.b16 %v472, %v471
        %v504 = vpack.c.b16 %v474, %v473
        %v505 = vpack.c.b16 %v476, %v475
        %v506 = vpack.c.b16 %v478, %v477
        %v507 = vpack.c.b16 %v480, %v479
        %v508 = vpack.c.b16 %v482, %v481
        %v509 = vpack.c.b16 %v484, %v483
        %v510 = vpack.c.b16 %v486, %v485
        %v511 = vpack.c.b16 %v488, %v487
        %v512 = vpack.c.b16 %v490, %v489
        %v513 = vpack.c.b16 %v492, %v491
        %v514 = vpack.c.b16 %v494, %v493
        %v515 = vpack.c.b16 %v496, %v495
        %v516 = vpack.c.b16 %v498, %v497
        %v517 = vpack.c.b16 %v500, %v499
        %v518 = vpack.c.b16 %v502, %v501
        %535 = vmatprep.subr.bf16.mxu0 0
        %536 = vmatpush1.bf16.msra.mxu0 %v503
        %537 = vmatprep.subr.bf16.mxu0 0
        %538 = vmatpush1.bf16.msra.mxu0 %v504
        %539 = vmatprep.subr.bf16.mxu0 0
        %540 = vmatpush1.bf16.msra.mxu0 %v505
        %541 = vmatprep.subr.bf16.mxu0 0
        %542 = vmatpush1.bf16.msra.mxu0 %v506
        %543 = vmatprep.subr.bf16.mxu0 0
        %544 = vmatpush1.bf16.msra.mxu0 %v507
        %545 = vmatprep.subr.bf16.mxu0 0
        %546 = vmatpush1.bf16.msra.mxu0 %v508
        %547 = vmatprep.subr.bf16.mxu0 0
        %548 = vmatpush1.bf16.msra.mxu0 %v509
        %549 = vmatprep.subr.bf16.mxu0 0
        %550 = vmatpush1.bf16.msra.mxu0 %v510
        %551 = vmatprep.subr.bf16.mxu0 0
        %552 = vmatpush1.bf16.msra.mxu0 %v511
        %553 = vmatprep.subr.bf16.mxu0 0
        %554 = vmatpush1.bf16.msra.mxu0 %v512
        %555 = vmatprep.subr.bf16.mxu0 0
        %556 = vmatpush1.bf16.msra.mxu0 %v513
        %557 = vmatprep.subr.bf16.mxu0 0
        %558 = vmatpush1.bf16.msra.mxu0 %v514
        %559 = vmatprep.subr.bf16.mxu0 0
        %560 = vmatpush1.bf16.msra.mxu0 %v515
        %561 = vmatprep.subr.bf16.mxu0 0
        %562 = vmatpush1.bf16.msra.mxu0 %v516
        %563 = vmatprep.subr.bf16.mxu0 0
        %564 = vmatpush1.bf16.msra.mxu0 %v517
        %565 = vmatprep.subr.bf16.mxu0 0
        %566 = vmatpush1.bf16.msra.mxu0 %v518
        %567 = vmatprep.mubr.bf16.mxu0 %v424
        %568 = vmatmul.mubr.bf16.gmra.mrb[0].mxu0 %v423
        %v569 = vpop.f32.mrb[0].mxu0
        %v570 = vadd.f32 0.0, %v569
        %v571 = vpop.f32.mrb[0].mxu0
        %v572 = vpop.f32.mrb[0].mxu0
        %v573 = vadd.f32 0.0, %v572
        %v574 = vpop.f32.mrb[0].mxu0
        %575 = vmatprep.mubr.bf16.mxu0 %v426
        %576 = vmatmul.mubr.bf16.gmra.mrb[0].mxu0 %v425
        %v577 = vpop.f32.mrb[0].mxu0
        %v578 = vadd.f32 0.0, %v577
        %v579 = vpop.f32.mrb[0].mxu0
        %v580 = vpop.f32.mrb[0].mxu0
        %v581 = vadd.f32 0.0, %v580
        %v582 = vpop.f32.mrb[0].mxu0
        %583 = vmatprep.mubr.bf16.mxu0 %v428
        %584 = vmatmul.mubr.bf16.gmra.mrb[0].mxu0 %v427
        %v585 = vpop.f32.mrb[0].mxu0
        %v586 = vadd.f32 0.0, %v585
        %v587 = vpop.f32.mrb[0].mxu0
        %v588 = vpop.f32.mrb[0].mxu0
        %v589 = vadd.f32 0.0, %v588
        %v590 = vpop.f32.mrb[0].mxu0
        %591 = vmatprep.mubr.bf16.mxu0 %v430
        %592 = vmatmul.mubr.bf16.gmra.mrb[0].mxu0 %v429
        %v593 = vpop.f32.mrb[0].mxu0
        %v594 = vadd.f32 0.0, %v593
        %v595 = vpop.f32.mrb[0].mxu0
        %v596 = vpop.f32.mrb[0].mxu0
        %v597 = vadd.f32 0.0, %v596
        %v598 = vpop.f32.mrb[0].mxu0
        %599 = vdwg.mxu0
        %v600 = vld [vmem:[%s2] sm:$0x1]
        %v602 = vlaneseq
        %v603 = vshrl.u32 %v602, 7
        %v604 = vsub.s32 0, %v603
        %v605 = vrot.slane %v600, %v604
        %v607 = vmul.f32 %v570, %v605
        %v608 = vmul.f32 %v573, %v605
        %v609 = vmul.f32 %v578, %v605
        %v610 = vmul.f32 %v581, %v605
        %v611 = vmul.f32 %v586, %v605
        %v612 = vmul.f32 %v589, %v605
        %v613 = vmul.f32 %v594, %v605
        %v614 = vmul.f32 %v597, %v605
        %v615 = vld [vmem:[%s3] sm:$0x1]
        %v617 = vlaneseq
        %v618 = vshrl.u32 %v617, 7
        %v619 = vsub.s32 0, %v618
        %v620 = vrot.slane %v615, %v619
        %v622 = vadd.f32 %v607, %v620
        %v623 = vadd.f32 %v608, %v620
        %v624 = vadd.f32 %v609, %v620
        %v625 = vadd.f32 %v610, %v620
        %v626 = vadd.f32 %v611, %v620
        %v627 = vadd.f32 %v612, %v620
        %v628 = vadd.f32 %v613, %v620
        %v629 = vadd.f32 %v614, %v620
        %v630 = vmax.f32 %v622, 0.0
        %v631 = vmax.f32 %v623, 0.0
        %v632 = vmax.f32 %v624, 0.0
        %v633 = vmax.f32 %v625, 0.0
        %v634 = vmax.f32 %v626, 0.0
        %v635 = vmax.f32 %v627, 0.0
        %v636 = vmax.f32 %v628, 0.0
        %v637 = vmax.f32 %v629, 0.0
        %v638 = vpack.c.bf16 %v631, %v630
        %v639 = vpack.c.bf16 %v633, %v632
        %v640 = vpack.c.bf16 %v635, %v634
        %v641 = vpack.c.bf16 %v637, %v636
        %vm642 = vcmask 519168
        %643 = vst.msk [vmem:[#allocation2] sm:$0xf] %vm642, 0
        %vm644 = vcmask 516096
        %645 = vst.msk [vmem:[#allocation2 + $0x4] sm:$0x1] %vm644, 0
        %646 = vst.msk [vmem:[#allocation2 + $0x8] sm:$0xf] %vm642, 0
        %647 = vst.msk [vmem:[#allocation2 + $0xc] sm:$0x1] %vm644, 0
        %648 = vst.msk [vmem:[#allocation2 + $0x10] sm:$0xf] %vm642, 0
        %649 = vst.msk [vmem:[#allocation2 + $0x14] sm:$0x1] %vm644, 0
        %650 = vst.msk [vmem:[#allocation2 + $0x18] sm:$0xf] %vm642, 0
        %651 = vst.msk [vmem:[#allocation2 + $0x1c] sm:$0x1] %vm644, 0
        %652 = vst.msk [vmem:[#allocation2 + $0x20] sm:$0xf] %vm642, 0
        %653 = vst.msk [vmem:[#allocation2 + $0x24] sm:$0x1] %vm644, 0
        %654 = vst.msk [vmem:[#allocation2 + $0x28] sm:$0xf] %vm642, 0
        %655 = vst.msk [vmem:[#allocation2 + $0x2c] sm:$0x1] %vm644, 0
        %656 = vst.msk [vmem:[#allocation2 + $0x30] sm:$0xf] %vm642, 0
        %657 = vst.msk [vmem:[#allocation2 + $0x34] sm:$0x1] %vm644, 0
        %658 = vst.msk [vmem:[#allocation2 + $0x38] sm:$0xf] %vm642, 0
        %659 = vst.msk [vmem:[#allocation2 + $0x3c] sm:$0x1] %vm644, 0
        %660 = vst.msk [vmem:[#allocation2 + $0x40] sm:$0xf] %vm642, 0
        %661 = vst.msk [vmem:[#allocation2 + $0x44] sm:$0x1] %vm644, 0
        %662 = vst.msk [vmem:[#allocation2 + $0x48] sm:$0xf] %vm642, 0
        %663 = vst.msk [vmem:[#allocation2 + $0x4c] sm:$0x1] %vm644, 0
        %v668 = vunpack.c.l.b16 %v638
        %v669 = vunpack.c.h.b16 %v638
        %v670 = vunpack.c.l.b16 %v639
        %v671 = vunpack.c.h.b16 %v639
        %v672 = vunpack.c.l.b16 %v640
        %v673 = vunpack.c.h.b16 %v640
        %v674 = vunpack.c.l.b16 %v641
        %v675 = vunpack.c.h.b16 %v641
        %v676 = vpack.c.b16 %v668, %v668
        %v677 = vpack.c.b16 %v669, %v669
        %v678 = vpack.c.b16 %v670, %v670
        %v679 = vpack.c.b16 %v671, %v671
        %v680 = vpack.c.b16 %v672, %v672
        %v681 = vpack.c.b16 %v673, %v673
        %v682 = vpack.c.b16 %v674, %v674
        %v683 = vpack.c.b16 %v675, %v675
        %v685 = vshrl.u32 %v676, 16
        %v687 = vrot.slane %v685, 7
        %v688 = vshll.u32 %v676, 16
        %v690 = vor.u32 %v687, %v688
        %v691 = vrot.slane %v687, 4
        %v693 = vshrl.u32 %v677, 16
        %v695 = vrot.slane %v693, 7
        %v696 = vshll.u32 %v677, 16
        %v698 = vor.u32 %v695, %v696
        %v699 = vrot.slane %v695, 4
        %v701 = vshrl.u32 %v678, 16
        %v703 = vrot.slane %v701, 7
        %v704 = vshll.u32 %v678, 16
        %v706 = vor.u32 %v703, %v704
        %v707 = vrot.slane %v703, 4
        %v709 = vshrl.u32 %v679, 16
        %v711 = vrot.slane %v709, 7
        %v712 = vshll.u32 %v679, 16
        %v714 = vor.u32 %v711, %v712
        %v715 = vrot.slane %v711, 4
        %v717 = vshrl.u32 %v680, 16
        %v719 = vrot.slane %v717, 7
        %v720 = vshll.u32 %v680, 16
        %v722 = vor.u32 %v719, %v720
        %v723 = vrot.slane %v719, 4
        %v725 = vshrl.u32 %v681, 16
        %v727 = vrot.slane %v725, 7
        %v728 = vshll.u32 %v681, 16
        %v730 = vor.u32 %v727, %v728
        %v731 = vrot.slane %v727, 4
        %v733 = vshrl.u32 %v682, 16
        %v735 = vrot.slane %v733, 7
        %v736 = vshll.u32 %v682, 16
        %v738 = vor.u32 %v735, %v736
        %v739 = vrot.slane %v735, 4
        %v741 = vshrl.u32 %v683, 16
        %v743 = vrot.slane %v741, 7
        %v744 = vshll.u32 %v683, 16
        %v746 = vor.u32 %v743, %v744
        %v747 = vrot.slane %v743, 4
        %s764 = scalar_lea.vmem [#allocation2], 8
        %vm765 = vcmask 519168
        %vm766 = vsmask.f32 7938
        %vm767 = vmand %vm765, %vm766
        %v768 = vld [vmem:[%s764] sm:$0xf]
        %v769 = vsel %vm767, %v690, %v768
        %770 = vst [vmem:[%s764] sm:$0xf] %v769
        %vm771 = vcmask 516096
        %vm772 = vsmask.f32 256
        %vm773 = vmand %vm771, %vm772
        %v774 = vld [vmem:[%s764 + $0x4] sm:$0x1]
        %v775 = vsel %vm773, %v691, %v774
        %776 = vst [vmem:[%s764 + $0x4] sm:$0x1] %v775
        %v777 = vld [vmem:[%s764 + $0x8] sm:$0xf]
        %v778 = vsel %vm767, %v698, %v777
        %779 = vst [vmem:[%s764 + $0x8] sm:$0xf] %v778
        %v780 = vld [vmem:[%s764 + $0xc] sm:$0x1]
        %v781 = vsel %vm773, %v699, %v780
        %782 = vst [vmem:[%s764 + $0xc] sm:$0x1] %v781
        %v783 = vld [vmem:[%s764 + $0x10] sm:$0xf]
        %v784 = vsel %vm767, %v706, %v783
        %785 = vst [vmem:[%s764 + $0x10] sm:$0xf] %v784
        %v786 = vld [vmem:[%s764 + $0x14] sm:$0x1]
        %v787 = vsel %vm773, %v707, %v786
        %788 = vst [vmem:[%s764 + $0x14] sm:$0x1] %v787
        %v789 = vld [vmem:[%s764 + $0x18] sm:$0xf]
        %v790 = vsel %vm767, %v714, %v789
        %791 = vst [vmem:[%s764 + $0x18] sm:$0xf] %v790
        %v792 = vld [vmem:[%s764 + $0x1c] sm:$0x1]
        %v793 = vsel %vm773, %v715, %v792
        %794 = vst [vmem:[%s764 + $0x1c] sm:$0x1] %v793
        %v795 = vld [vmem:[%s764 + $0x20] sm:$0xf]
        %v796 = vsel %vm767, %v722, %v795
        %797 = vst [vmem:[%s764 + $0x20] sm:$0xf] %v796
        %v798 = vld [vmem:[%s764 + $0x24] sm:$0x1]
        %v799 = vsel %vm773, %v723, %v798
        %800 = vst [vmem:[%s764 + $0x24] sm:$0x1] %v799
        %v801 = vld [vmem:[%s764 + $0x28] sm:$0xf]
        %v802 = vsel %vm767, %v730, %v801
        %803 = vst [vmem:[%s764 + $0x28] sm:$0xf] %v802
        %v804 = vld [vmem:[%s764 + $0x2c] sm:$0x1]
        %v805 = vsel %vm773, %v731, %v804
        %806 = vst [vmem:[%s764 + $0x2c] sm:$0x1] %v805
        %v807 = vld [vmem:[%s764 + $0x30] sm:$0xf]
        %v808 = vsel %vm767, %v738, %v807
        %809 = vst [vmem:[%s764 + $0x30] sm:$0xf] %v808
        %v810 = vld [vmem:[%s764 + $0x34] sm:$0x1]
        %v811 = vsel %vm773, %v739, %v810
        %812 = vst [vmem:[%s764 + $0x34] sm:$0x1] %v811
        %v813 = vld [vmem:[%s764 + $0x38] sm:$0xf]
        %v814 = vsel %vm767, %v746, %v813
        %815 = vst [vmem:[%s764 + $0x38] sm:$0xf] %v814
        %v816 = vld [vmem:[%s764 + $0x3c] sm:$0x1]
        %v817 = vsel %vm773, %v747, %v816
        %818 = vst [vmem:[%s764 + $0x3c] sm:$0x1] %v817
        %v819 = vld [vmem:[#allocation2] sm:$0xf]
        %v820 = vld [vmem:[#allocation2 + $0x4] sm:$0x1]
        %v821 = vld [vmem:[#allocation2 + $0x8] sm:$0xf]
        %v822 = vld [vmem:[#allocation2 + $0xc] sm:$0x1]
        %v823 = vld [vmem:[#allocation2 + $0x10] sm:$0xf]
        %v824 = vld [vmem:[#allocation2 + $0x14] sm:$0x1]
        %v825 = vld [vmem:[#allocation2 + $0x18] sm:$0xf]
        %v826 = vld [vmem:[#allocation2 + $0x1c] sm:$0x1]
        %v827 = vld [vmem:[#allocation2 + $0x20] sm:$0xf]
        %v828 = vld [vmem:[#allocation2 + $0x24] sm:$0x1]
        %v829 = vld [vmem:[#allocation2 + $0x28] sm:$0xf]
        %v830 = vld [vmem:[#allocation2 + $0x2c] sm:$0x1]
        %v831 = vld [vmem:[#allocation2 + $0x30] sm:$0xf]
        %v832 = vld [vmem:[#allocation2 + $0x34] sm:$0x1]
        %v833 = vld [vmem:[#allocation2 + $0x38] sm:$0xf]
        %v834 = vld [vmem:[#allocation2 + $0x3c] sm:$0x1]
        %v835 = vld [vmem:[#allocation2 + $0x40] sm:$0xf]
        %v836 = vld [vmem:[#allocation2 + $0x44] sm:$0x1]
        %v837 = vld [vmem:[#allocation2 + $0x48] sm:$0xf]
        %v838 = vld [vmem:[#allocation2 + $0x4c] sm:$0x1]
        %v839 = vld [vmem:[%s4] sm:$0xf]
        %v840 = vld [vmem:[%s4 + $0x4] sm:$0xf]
        %v841 = vld [vmem:[%s4 + $0x8] sm:$0xf]
        %v842 = vld [vmem:[%s4 + $0xc] sm:$0xf]
        %v843 = vld [vmem:[%s4 + $0x10] sm:$0xf]
        %v844 = vld [vmem:[%s4 + $0x14] sm:$0xf]
        %v845 = vld [vmem:[%s4 + $0x18] sm:$0xf]
        %v846 = vld [vmem:[%s4 + $0x1c] sm:$0xf]
        %s847 = scalar_lea.vmem %s4, 96
        %v848 = vld [vmem:[%s847] sm:$0xf]
        %v849 = vld [vmem:[%s847 + $0x4] sm:$0xf]
        %v850 = vld [vmem:[%s847 + $0x8] sm:$0xf]
        %v851 = vld [vmem:[%s847 + $0xc] sm:$0xf]
        %v852 = vld [vmem:[%s847 + $0x10] sm:$0xf]
        %v853 = vld [vmem:[%s847 + $0x14] sm:$0xf]
        %v854 = vld [vmem:[%s847 + $0x18] sm:$0xf]
        %v855 = vld [vmem:[%s847 + $0x1c] sm:$0xf]
        %v864 = vunpack.c.l.b16 %v821
        %v865 = vunpack.c.l.b16 %v823
        %v866 = vunpack.c.l.b16 %v825
        %v867 = vunpack.c.l.b16 %v827
        %v868 = vunpack.c.l.b16 %v829
        %v869 = vunpack.c.l.b16 %v831
        %v870 = vunpack.c.l.b16 %v833
        %v871 = vunpack.c.l.b16 %v835
        %v872 = vpack.c.b16 %v865, %v864
        %v873 = vpack.c.b16 %v867, %v866
        %v874 = vpack.c.b16 %v869, %v868
        %v875 = vpack.c.b16 %v871, %v870
        %v884 = vunpack.c.l.b16 %v848
        %v885 = vunpack.c.l.b16 %v849
        %v886 = vunpack.c.l.b16 %v850
        %v887 = vunpack.c.l.b16 %v851
        %v888 = vunpack.c.l.b16 %v852
        %v889 = vunpack.c.l.b16 %v853
        %v890 = vunpack.c.l.b16 %v854
        %v891 = vunpack.c.l.b16 %v855
        %v892 = vpack.c.b16 %v885, %v884
        %v893 = vpack.c.b16 %v887, %v886
        %v894 = vpack.c.b16 %v889, %v888
        %v895 = vpack.c.b16 %v891, %v890
        %vm900 = vcmask 523264
        %v902 = vsel %vm900, %v872, 0
        %v905 = vsel %vm900, %v873, 0
        %v908 = vsel %vm900, %v874, 0
        %v911 = vsel %vm900, %v875, 0
        %913 = vmatprep.subr.bf16.mxu0 0
        %914 = vmatpush1.bf16.msra.mxu0 %v892
        %915 = vmatprep.subr.bf16.mxu0 0
        %916 = vmatpush1.bf16.msra.mxu0 %v893
        %917 = vmatprep.subr.bf16.mxu0 0
        %918 = vmatpush1.bf16.msra.mxu0 %v894
        %919 = vmatprep.subr.bf16.mxu0 0
        %920 = vmatpush1.bf16.msra.mxu0 %v895
        %921 = vmatprep.subr.bf16.mxu0 0
        %922 = vmatpush1.bf16.msra.mxu0 0
        %923 = vmatprep.subr.bf16.mxu0 0
        %924 = vmatpush1.bf16.msra.mxu0 0
        %925 = vmatprep.subr.bf16.mxu0 0
        %926 = vmatpush1.bf16.msra.mxu0 0
        %927 = vmatprep.subr.bf16.mxu0 0
        %928 = vmatpush1.bf16.msra.mxu0 0
        %929 = vmatprep.subr.bf16.mxu0 0
        %930 = vmatpush1.bf16.msra.mxu0 0
        %931 = vmatprep.subr.bf16.mxu0 0
        %932 = vmatpush1.bf16.msra.mxu0 0
        %933 = vmatprep.subr.bf16.mxu0 0
        %934 = vmatpush1.bf16.msra.mxu0 0
        %935 = vmatprep.subr.bf16.mxu0 0
        %936 = vmatpush1.bf16.msra.mxu0 0
        %937 = vmatprep.subr.bf16.mxu0 0
        %938 = vmatpush1.bf16.msra.mxu0 0
        %939 = vmatprep.subr.bf16.mxu0 0
        %940 = vmatpush1.bf16.msra.mxu0 0
        %941 = vmatprep.subr.bf16.mxu0 0
        %942 = vmatpush1.bf16.msra.mxu0 0
        %943 = vmatprep.subr.bf16.mxu0 0
        %944 = vmatpush1.bf16.msra.mxu0 0
        %945 = vmatprep.mubr.bf16.mxu0 0
        %946 = vmatmul.mubr.bf16.gmra.mrb[0].mxu0 %v902
        %v947 = vpop.f32.mrb[0].mxu0
        %v948 = vadd.f32 0.0, %v947
        %v949 = vpop.f32.mrb[0].mxu0
        %v950 = vpop.f32.mrb[0].mxu0
        %v951 = vadd.f32 0.0, %v950
        %v952 = vpop.f32.mrb[0].mxu0
        %953 = vmatprep.mubr.bf16.mxu0 0
        %954 = vmatmul.mubr.bf16.gmra.mrb[0].mxu0 %v905
        %v955 = vpop.f32.mrb[0].mxu0
        %v956 = vadd.f32 0.0, %v955
        %v957 = vpop.f32.mrb[0].mxu0
        %v958 = vpop.f32.mrb[0].mxu0
        %v959 = vadd.f32 0.0, %v958
        %v960 = vpop.f32.mrb[0].mxu0
        %961 = vmatprep.mubr.bf16.mxu0 0
        %962 = vmatmul.mubr.bf16.gmra.mrb[0].mxu0 %v908
        %v963 = vpop.f32.mrb[0].mxu0
        %v964 = vadd.f32 0.0, %v963
        %v965 = vpop.f32.mrb[0].mxu0
        %v966 = vpop.f32.mrb[0].mxu0
        %v967 = vadd.f32 0.0, %v966
        %v968 = vpop.f32.mrb[0].mxu0
        %969 = vmatprep.mubr.bf16.mxu0 0
        %970 = vmatmul.mubr.bf16.gmra.mrb[0].mxu0 %v911
        %v971 = vpop.f32.mrb[0].mxu0
        %v972 = vadd.f32 0.0, %v971
        %v973 = vpop.f32.mrb[0].mxu0
        %v974 = vpop.f32.mrb[0].mxu0
        %v975 = vadd.f32 0.0, %v974
        %v976 = vpop.f32.mrb[0].mxu0
        %977 = vdwg.mxu0
        %v979 = vunpack.c.l.b16 %v819
        %v980 = vpack.c.b16 %v864, %v979
        %v981 = vpack.c.b16 %v866, %v865
        %v982 = vpack.c.b16 %v868, %v867
        %v983 = vpack.c.b16 %v870, %v869
        %v992 = vunpack.c.l.b16 %v839
        %v993 = vunpack.c.l.b16 %v840
        %v994 = vunpack.c.l.b16 %v841
        %v995 = vunpack.c.l.b16 %v842
        %v996 = vunpack.c.l.b16 %v843
        %v997 = vunpack.c.l.b16 %v844
        %v998 = vunpack.c.l.b16 %v845
        %v999 = vunpack.c.l.b16 %v846
        %v1000 = vpack.c.b16 %v993, %v992
        %v1001 = vpack.c.b16 %v995, %v994
        %v1002 = vpack.c.b16 %v997, %v996
        %v1003 = vpack.c.b16 %v999, %v998
        %v1009 = vsel %vm900, %v980, 0
        %v1012 = vsel %vm900, %v981, 0
        %v1015 = vsel %vm900, %v982, 0
        %v1018 = vsel %vm900, %v983, 0
        %1020 = vmatprep.subr.bf16.mxu0 0
        %1021 = vmatpush1.bf16.msra.mxu0 %v1000
        %1022 = vmatprep.subr.bf16.mxu0 0
        %1023 = vmatpush1.bf16.msra.mxu0 %v1001
        %1024 = vmatprep.subr.bf16.mxu0 0
        %1025 = vmatpush1.bf16.msra.mxu0 %v1002
        %1026 = vmatprep.subr.bf16.mxu0 0
        %1027 = vmatpush1.bf16.msra.mxu0 %v1003
        %1028 = vmatprep.subr.bf16.mxu0 0
        %1029 = vmatpush1.bf16.msra.mxu0 0
        %1030 = vmatprep.subr.bf16.mxu0 0
        %1031 = vmatpush1.bf16.msra.mxu0 0
        %1032 = vmatprep.subr.bf16.mxu0 0
        %1033 = vmatpush1.bf16.msra.mxu0 0
        %1034 = vmatprep.subr.bf16.mxu0 0
        %1035 = vmatpush1.bf16.msra.mxu0 0
        %1036 = vmatprep.subr.bf16.mxu0 0
        %1037 = vmatpush1.bf16.msra.mxu0 0
        %1038 = vmatprep.subr.bf16.mxu0 0
        %1039 = vmatpush1.bf16.msra.mxu0 0
        %1040 = vmatprep.subr.bf16.mxu0 0
        %1041 = vmatpush1.bf16.msra.mxu0 0
        %1042 = vmatprep.subr.bf16.mxu0 0
        %1043 = vmatpush1.bf16.msra.mxu0 0
        %1044 = vmatprep.subr.bf16.mxu0 0
        %1045 = vmatpush1.bf16.msra.mxu0 0
        %1046 = vmatprep.subr.bf16.mxu0 0
        %1047 = vmatpush1.bf16.msra.mxu0 0
        %1048 = vmatprep.subr.bf16.mxu0 0
        %1049 = vmatpush1.bf16.msra.mxu0 0
        %1050 = vmatprep.subr.bf16.mxu0 0
        %1051 = vmatpush1.bf16.msra.mxu0 0
        %1052 = vmatprep.mubr.bf16.mxu0 0
        %1053 = vmatmul.mubr.bf16.gmra.mrb[0].mxu0 %v1009
        %v1054 = vpop.f32.mrb[0].mxu0
        %v1055 = vadd.f32 %v948, %v1054
        %v1056 = vpop.f32.mrb[0].mxu0
        %v1057 = vpop.f32.mrb[0].mxu0
        %v1058 = vadd.f32 %v951, %v1057
        %v1059 = vpop.f32.mrb[0].mxu0
        %1060 = vmatprep.mubr.bf16.mxu0 0
        %1061 = vmatmul.mubr.bf16.gmra.mrb[0].mxu0 %v1012
        %v1062 = vpop.f32.mrb[0].mxu0
        %v1063 = vadd.f32 %v956, %v1062
        %v1064 = vpop.f32.mrb[0].mxu0
        %v1065 = vpop.f32.mrb[0].mxu0
        %v1066 = vadd.f32 %v959, %v1065
        %v1067 = vpop.f32.mrb[0].mxu0
        %1068 = vmatprep.mubr.bf16.mxu0 0
        %1069 = vmatmul.mubr.bf16.gmra.mrb[0].mxu0 %v1015
        %v1070 = vpop.f32.mrb[0].mxu0
        %v1071 = vadd.f32 %v964, %v1070
        %v1072 = vpop.f32.mrb[0].mxu0
        %v1073 = vpop.f32.mrb[0].mxu0
        %v1074 = vadd.f32 %v967, %v1073
        %v1075 = vpop.f32.mrb[0].mxu0
        %1076 = vmatprep.mubr.bf16.mxu0 0
        %1077 = vmatmul.mubr.bf16.gmra.mrb[0].mxu0 %v1018
        %v1078 = vpop.f32.mrb[0].mxu0
        %v1079 = vadd.f32 %v972, %v1078
        %v1080 = vpop.f32.mrb[0].mxu0
        %v1081 = vpop.f32.mrb[0].mxu0
        %v1082 = vadd.f32 %v975, %v1081
        %v1083 = vpop.f32.mrb[0].mxu0
        %1084 = vdwg.mxu0
        %s1085 = scalar_lea.vmem %s4, 192
        %v1086 = vld [vmem:[%s1085] sm:$0xf]
        %v1087 = vld [vmem:[%s1085 + $0x4] sm:$0xf]
        %v1088 = vld [vmem:[%s1085 + $0x8] sm:$0xf]
        %v1089 = vld [vmem:[%s1085 + $0xc] sm:$0xf]
        %v1090 = vld [vmem:[%s1085 + $0x10] sm:$0xf]
        %v1091 = vld [vmem:[%s1085 + $0x14] sm:$0xf]
        %v1092 = vld [vmem:[%s1085 + $0x18] sm:$0xf]
        %v1093 = vld [vmem:[%s1085 + $0x1c] sm:$0xf]
        %v1095 = vunpack.c.l.b16 %v837
        %v1096 = vpack.c.b16 %v1095, %v871
        %v1105 = vunpack.c.l.b16 %v1086
        %v1106 = vunpack.c.l.b16 %v1087
        %v1107 = vunpack.c.l.b16 %v1088
        %v1108 = vunpack.c.l.b16 %v1089
        %v1109 = vunpack.c.l.b16 %v1090
        %v1110 = vunpack.c.l.b16 %v1091
        %v1111 = vunpack.c.l.b16 %v1092
        %v1112 = vunpack.c.l.b16 %v1093
        %v1113 = vpack.c.b16 %v1106, %v1105
        %v1114 = vpack.c.b16 %v1108, %v1107
        %v1115 = vpack.c.b16 %v1110, %v1109
        %v1116 = vpack.c.b16 %v1112, %v1111
        %v1122 = vsel %vm900, %v1096, 0
        %1124 = vmatprep.subr.bf16.mxu0 0
        %1125 = vmatpush1.bf16.msra.mxu0 %v1113
        %1126 = vmatprep.subr.bf16.mxu0 0
        %1127 = vmatpush1.bf16.msra.mxu0 %v1114
        %1128 = vmatprep.subr.bf16.mxu0 0
        %1129 = vmatpush1.bf16.msra.mxu0 %v1115
        %1130 = vmatprep.subr.bf16.mxu0 0
        %1131 = vmatpush1.bf16.msra.mxu0 %v1116
        %1132 = vmatprep.subr.bf16.mxu0 0
        %1133 = vmatpush1.bf16.msra.mxu0 0
        %1134 = vmatprep.subr.bf16.mxu0 0
        %1135 = vmatpush1.bf16.msra.mxu0 0
        %1136 = vmatprep.subr.bf16.mxu0 0
        %1137 = vmatpush1.bf16.msra.mxu0 0
        %1138 = vmatprep.subr.bf16.mxu0 0
        %1139 = vmatpush1.bf16.msra.mxu0 0
        %1140 = vmatprep.subr.bf16.mxu0 0
        %1141 = vmatpush1.bf16.msra.mxu0 0
        %1142 = vmatprep.subr.bf16.mxu0 0
        %1143 = vmatpush1.bf16.msra.mxu0 0
        %1144 = vmatprep.subr.bf16.mxu0 0
        %1145 = vmatpush1.bf16.msra.mxu0 0
        %1146 = vmatprep.subr.bf16.mxu0 0
        %1147 = vmatpush1.bf16.msra.mxu0 0
        %1148 = vmatprep.subr.bf16.mxu0 0
        %1149 = vmatpush1.bf16.msra.mxu0 0
        %1150 = vmatprep.subr.bf16.mxu0 0
        %1151 = vmatpush1.bf16.msra.mxu0 0
        %1152 = vmatprep.subr.bf16.mxu0 0
        %1153 = vmatpush1.bf16.msra.mxu0 0
        %1154 = vmatprep.subr.bf16.mxu0 0
        %1155 = vmatpush1.bf16.msra.mxu0 0
        %1156 = vmatprep.mubr.bf16.mxu0 0
        %1157 = vmatmul.mubr.bf16.gmra.mrb[0].mxu0 %v1012
        %v1158 = vpop.f32.mrb[0].mxu0
        %v1159 = vadd.f32 0.0, %v1158
        %v1160 = vpop.f32.mrb[0].mxu0
        %v1161 = vpop.f32.mrb[0].mxu0
        %v1162 = vadd.f32 0.0, %v1161
        %v1163 = vpop.f32.mrb[0].mxu0
        %1164 = vmatprep.mubr.bf16.mxu0 0
        %1165 = vmatmul.mubr.bf16.gmra.mrb[0].mxu0 %v1015
        %v1166 = vpop.f32.mrb[0].mxu0
        %v1167 = vadd.f32 0.0, %v1166
        %v1168 = vpop.f32.mrb[0].mxu0
        %v1169 = vpop.f32.mrb[0].mxu0
        %v1170 = vadd.f32 0.0, %v1169
        %v1171 = vpop.f32.mrb[0].mxu0
        %1172 = vmatprep.mubr.bf16.mxu0 0
        %1173 = vmatmul.mubr.bf16.gmra.mrb[0].mxu0 %v1018
        %v1174 = vpop.f32.mrb[0].mxu0
        %v1175 = vadd.f32 0.0, %v1174
        %v1176 = vpop.f32.mrb[0].mxu0
        %v1177 = vpop.f32.mrb[0].mxu0
        %v1178 = vadd.f32 0.0, %v1177
        %v1179 = vpop.f32.mrb[0].mxu0
        %1180 = vmatprep.mubr.bf16.mxu0 0
        %1181 = vmatmul.mubr.bf16.gmra.mrb[0].mxu0 %v1122
        %v1182 = vpop.f32.mrb[0].mxu0
        %v1183 = vadd.f32 0.0, %v1182
        %v1184 = vpop.f32.mrb[0].mxu0
        %v1185 = vpop.f32.mrb[0].mxu0
        %v1186 = vadd.f32 0.0, %v1185
        %v1187 = vpop.f32.mrb[0].mxu0
        %1188 = vdwg.mxu0
        %v1189 = vadd.f32 %v1055, %v1159
        %v1190 = vadd.f32 %v1058, %v1162
        %v1191 = vadd.f32 %v1063, %v1167
        %v1192 = vadd.f32 %v1066, %v1170
        %v1193 = vadd.f32 %v1071, %v1175
        %v1194 = vadd.f32 %v1074, %v1178
        %v1195 = vadd.f32 %v1079, %v1183
        %v1196 = vadd.f32 %v1082, %v1186
        %vm1197 = vsmask.f32 3328
        %vm1198 = vsmask.f32 7440
        %vm1199 = vmor %vm1197, %vm1198
        %v1201 = vshrl.u32 %v819, 16
        %v1203 = vrot.slane %v1201, 4
        %v1204 = vshll.u32 %v819, 16
        %v1206 = vrot.slane %v1204, 5
        %v1207 = vor.u32 %v1203, %v1206
        %v1208 = vrot.slane %v1207, 4
        %v1210 = vshll.u32 %v820, 16
        %v1212 = vrot.slane %v1210, 5
        %v1213 = vsel %vm1199, %v1208, %v1212
        %v1215 = vshrl.u32 %v821, 16
        %v1217 = vrot.slane %v1215, 4
        %v1218 = vshll.u32 %v821, 16
        %v1220 = vrot.slane %v1218, 5
        %v1221 = vor.u32 %v1217, %v1220
        %v1222 = vrot.slane %v1221, 4
        %v1224 = vshll.u32 %v822, 16
        %v1226 = vrot.slane %v1224, 5
        %v1227 = vsel %vm1199, %v1222, %v1226
        %v1229 = vshrl.u32 %v823, 16
        %v1231 = vrot.slane %v1229, 4
        %v1232 = vshll.u32 %v823, 16
        %v1234 = vrot.slane %v1232, 5
        %v1235 = vor.u32 %v1231, %v1234
        %v1236 = vrot.slane %v1235, 4
        %v1238 = vshll.u32 %v824, 16
        %v1240 = vrot.slane %v1238, 5
        %v1241 = vsel %vm1199, %v1236, %v1240
        %v1243 = vshrl.u32 %v825, 16
        %v1245 = vrot.slane %v1243, 4
        %v1246 = vshll.u32 %v825, 16
        %v1248 = vrot.slane %v1246, 5
        %v1249 = vor.u32 %v1245, %v1248
        %v1250 = vrot.slane %v1249, 4
        %v1252 = vshll.u32 %v826, 16
        %v1254 = vrot.slane %v1252, 5
        %v1255 = vsel %vm1199, %v1250, %v1254
        %v1257 = vshrl.u32 %v827, 16
        %v1259 = vrot.slane %v1257, 4
        %v1260 = vshll.u32 %v827, 16
        %v1262 = vrot.slane %v1260, 5
        %v1263 = vor.u32 %v1259, %v1262
        %v1264 = vrot.slane %v1263, 4
        %v1266 = vshll.u32 %v828, 16
        %v1268 = vrot.slane %v1266, 5
        %v1269 = vsel %vm1199, %v1264, %v1268
        %v1271 = vshrl.u32 %v829, 16
        %v1273 = vrot.slane %v1271, 4
        %v1274 = vshll.u32 %v829, 16
        %v1276 = vrot.slane %v1274, 5
        %v1277 = vor.u32 %v1273, %v1276
        %v1278 = vrot.slane %v1277, 4
        %v1280 = vshll.u32 %v830, 16
        %v1282 = vrot.slane %v1280, 5
        %v1283 = vsel %vm1199, %v1278, %v1282
        %v1285 = vshrl.u32 %v831, 16
        %v1287 = vrot.slane %v1285, 4
        %v1288 = vshll.u32 %v831, 16
        %v1290 = vrot.slane %v1288, 5
        %v1291 = vor.u32 %v1287, %v1290
        %v1292 = vrot.slane %v1291, 4
        %v1294 = vshll.u32 %v832, 16
        %v1296 = vrot.slane %v1294, 5
        %v1297 = vsel %vm1199, %v1292, %v1296
        %v1299 = vshrl.u32 %v833, 16
        %v1301 = vrot.slane %v1299, 4
        %v1302 = vshll.u32 %v833, 16
        %v1304 = vrot.slane %v1302, 5
        %v1305 = vor.u32 %v1301, %v1304
        %v1306 = vrot.slane %v1305, 4
        %v1308 = vshll.u32 %v834, 16
        %v1310 = vrot.slane %v1308, 5
        %v1311 = vsel %vm1199, %v1306, %v1310
        %s1312 = scalar_lea.vmem %s4, 32
        %v1313 = vld [vmem:[%s1312] sm:$0xf]
        %v1314 = vld [vmem:[%s1312 + $0x4] sm:$0xf]
        %v1315 = vld [vmem:[%s1312 + $0x8] sm:$0xf]
        %v1316 = vld [vmem:[%s1312 + $0xc] sm:$0xf]
        %v1317 = vld [vmem:[%s1312 + $0x10] sm:$0xf]
        %v1318 = vld [vmem:[%s1312 + $0x14] sm:$0xf]
        %v1319 = vld [vmem:[%s1312 + $0x18] sm:$0xf]
        %v1320 = vld [vmem:[%s1312 + $0x1c] sm:$0xf]
        %v1321 = vunpack.c.l.b16 %v1213
        %v1322 = vunpack.c.l.b16 %v1227
        %v1323 = vunpack.c.l.b16 %v1241
        %v1324 = vunpack.c.l.b16 %v1255
        %v1325 = vunpack.c.l.b16 %v1269
        %v1326 = vunpack.c.l.b16 %v1283
        %v1327 = vunpack.c.l.b16 %v1297
        %v1328 = vunpack.c.l.b16 %v1311
        %v1329 = vpack.c.b16 %v1322, %v1321
        %v1330 = vpack.c.b16 %v1324, %v1323
        %v1331 = vpack.c.b16 %v1326, %v1325
        %v1332 = vpack.c.b16 %v1328, %v1327
        %v1341 = vunpack.c.l.b16 %v1313
        %v1342 = vunpack.c.l.b16 %v1314
        %v1343 = vunpack.c.l.b16 %v1315
        %v1344 = vunpack.c.l.b16 %v1316
        %v1345 = vunpack.c.l.b16 %v1317
        %v1346 = vunpack.c.l.b16 %v1318
        %v1347 = vunpack.c.l.b16 %v1319
        %v1348 = vunpack.c.l.b16 %v1320
        %v1349 = vpack.c.b16 %v1342, %v1341
        %v1350 = vpack.c.b16 %v1344, %v1343
        %v1351 = vpack.c.b16 %v1346, %v1345
        %v1352 = vpack.c.b16 %v1348, %v1347
        %v1358 = vsel %vm900, %v1329, 0
        %v1361 = vsel %vm900, %v1330, 0
        %v1364 = vsel %vm900, %v1331, 0
        %v1367 = vsel %vm900, %v1332, 0
        %1369 = vmatprep.subr.bf16.mxu0 0
        %1370 = vmatpush1.bf16.msra.mxu0 %v1349
        %1371 = vmatprep.subr.bf16.mxu0 0
        %1372 = vmatpush1.bf16.msra.mxu0 %v1350
        %1373 = vmatprep.subr.bf16.mxu0 0
        %1374 = vmatpush1.bf16.msra.mxu0 %v1351
        %1375 = vmatprep.subr.bf16.mxu0 0
        %1376 = vmatpush1.bf16.msra.mxu0 %v1352
        %1377 = vmatprep.subr.bf16.mxu0 0
        %1378 = vmatpush1.bf16.msra.mxu0 0
        %1379 = vmatprep.subr.bf16.mxu0 0
        %1380 = vmatpush1.bf16.msra.mxu0 0
        %1381 = vmatprep.subr.bf16.mxu0 0
        %1382 = vmatpush1.bf16.msra.mxu0 0
        %1383 = vmatprep.subr.bf16.mxu0 0
        %1384 = vmatpush1.bf16.msra.mxu0 0
        %1385 = vmatprep.subr.bf16.mxu0 0
        %1386 = vmatpush1.bf16.msra.mxu0 0
        %1387 = vmatprep.subr.bf16.mxu0 0
        %1388 = vmatpush1.bf16.msra.mxu0 0
        %1389 = vmatprep.subr.bf16.mxu0 0
        %1390 = vmatpush1.bf16.msra.mxu0 0
        %1391 = vmatprep.subr.bf16.mxu0 0
        %1392 = vmatpush1.bf16.msra.mxu0 0
        %1393 = vmatprep.subr.bf16.mxu0 0
        %1394 = vmatpush1.bf16.msra.mxu0 0
        %1395 = vmatprep.subr.bf16.mxu0 0
        %1396 = vmatpush1.bf16.msra.mxu0 0
        %1397 = vmatprep.subr.bf16.mxu0 0
        %1398 = vmatpush1.bf16.msra.mxu0 0
        %1399 = vmatprep.subr.bf16.mxu0 0
        %1400 = vmatpush1.bf16.msra.mxu0 0
        %1401 = vmatprep.mubr.bf16.mxu0 0
        %1402 = vmatmul.mubr.bf16.gmra.mrb[0].mxu0 %v1358
        %v1403 = vpop.f32.mrb[0].mxu0
        %v1404 = vadd.f32 0.0, %v1403
        %v1405 = vpop.f32.mrb[0].mxu0
        %v1406 = vpop.f32.mrb[0].mxu0
        %v1407 = vadd.f32 0.0, %v1406
        %v1408 = vpop.f32.mrb[0].mxu0
        %1409 = vmatprep.mubr.bf16.mxu0 0
        %1410 = vmatmul.mubr.bf16.gmra.mrb[0].mxu0 %v1361
        %v1411 = vpop.f32.mrb[0].mxu0
        %v1412 = vadd.f32 0.0, %v1411
        %v1413 = vpop.f32.mrb[0].mxu0
        %v1414 = vpop.f32.mrb[0].mxu0
        %v1415 = vadd.f32 0.0, %v1414
        %v1416 = vpop.f32.mrb[0].mxu0
        %1417 = vmatprep.mubr.bf16.mxu0 0
        %1418 = vmatmul.mubr.bf16.gmra.mrb[0].mxu0 %v1364
        %v1419 = vpop.f32.mrb[0].mxu0
        %v1420 = vadd.f32 0.0, %v1419
        %v1421 = vpop.f32.mrb[0].mxu0
        %v1422 = vpop.f32.mrb[0].mxu0
        %v1423 = vadd.f32 0.0, %v1422
        %v1424 = vpop.f32.mrb[0].mxu0
        %1425 = vmatprep.mubr.bf16.mxu0 0
        %1426 = vmatmul.mubr.bf16.gmra.mrb[0].mxu0 %v1367
        %v1427 = vpop.f32.mrb[0].mxu0
        %v1428 = vadd.f32 0.0, %v1427
        %v1429 = vpop.f32.mrb[0].mxu0
        %v1430 = vpop.f32.mrb[0].mxu0
        %v1431 = vadd.f32 0.0, %v1430
        %v1432 = vpop.f32.mrb[0].mxu0
        %1433 = vdwg.mxu0
        %v1434 = vadd.f32 %v1189, %v1404
        %v1435 = vadd.f32 %v1190, %v1407
        %v1436 = vadd.f32 %v1191, %v1412
        %v1437 = vadd.f32 %v1192, %v1415
        %v1438 = vadd.f32 %v1193, %v1420
        %v1439 = vadd.f32 %v1194, %v1423
        %v1440 = vadd.f32 %v1195, %v1428
        %v1441 = vadd.f32 %v1196, %v1431
        %v1443 = vshrl.u32 %v835, 16
        %v1445 = vrot.slane %v1443, 4
        %v1446 = vshll.u32 %v835, 16
        %v1448 = vrot.slane %v1446, 5
        %v1449 = vor.u32 %v1445, %v1448
        %v1450 = vrot.slane %v1449, 4
        %v1452 = vshll.u32 %v836, 16
        %v1454 = vrot.slane %v1452, 5
        %v1455 = vsel %vm1199, %v1450, %v1454
        %s1456 = scalar_lea.vmem %s4, 128
        %v1457 = vld [vmem:[%s1456] sm:$0xf]
        %v1458 = vld [vmem:[%s1456 + $0x4] sm:$0xf]
        %v1459 = vld [vmem:[%s1456 + $0x8] sm:$0xf]
        %v1460 = vld [vmem:[%s1456 + $0xc] sm:$0xf]
        %v1461 = vld [vmem:[%s1456 + $0x10] sm:$0xf]
        %v1462 = vld [vmem:[%s1456 + $0x14] sm:$0xf]
        %v1463 = vld [vmem:[%s1456 + $0x18] sm:$0xf]
        %v1464 = vld [vmem:[%s1456 + $0x1c] sm:$0xf]
        %v1465 = vunpack.c.l.b16 %v1455
        %v1466 = vpack.c.b16 %v1323, %v1322
        %v1467 = vpack.c.b16 %v1325, %v1324
        %v1468 = vpack.c.b16 %v1327, %v1326
        %v1469 = vpack.c.b16 %v1465, %v1328
        %v1478 = vunpack.c.l.b16 %v1457
        %v1479 = vunpack.c.l.b16 %v1458
        %v1480 = vunpack.c.l.b16 %v1459
        %v1481 = vunpack.c.l.b16 %v1460
        %v1482 = vunpack.c.l.b16 %v1461
        %v1483 = vunpack.c.l.b16 %v1462
        %v1484 = vunpack.c.l.b16 %v1463
        %v1485 = vunpack.c.l.b16 %v1464
        %v1486 = vpack.c.b16 %v1479, %v1478
        %v1487 = vpack.c.b16 %v1481, %v1480
        %v1488 = vpack.c.b16 %v1483, %v1482
        %v1489 = vpack.c.b16 %v1485, %v1484
        %v1495 = vsel %vm900, %v1466, 0
        %v1498 = vsel %vm900, %v1467, 0
        %v1501 = vsel %vm900, %v1468, 0
        %v1504 = vsel %vm900, %v1469, 0
        %1506 = vmatprep.subr.bf16.mxu0 0
        %1507 = vmatpush1.bf16.msra.mxu0 %v1486
        %1508 = vmatprep.subr.bf16.mxu0 0
        %1509 = vmatpush1.bf16.msra.mxu0 %v1487
        %1510 = vmatprep.subr.bf16.mxu0 0
        %1511 = vmatpush1.bf16.msra.mxu0 %v1488
        %1512 = vmatprep.subr.bf16.mxu0 0
        %1513 = vmatpush1.bf16.msra.mxu0 %v1489
        %1514 = vmatprep.subr.bf16.mxu0 0
        %1515 = vmatpush1.bf16.msra.mxu0 0
        %1516 = vmatprep.subr.bf16.mxu0 0
        %1517 = vmatpush1.bf16.msra.mxu0 0
        %1518 = vmatprep.subr.bf16.mxu0 0
        %1519 = vmatpush1.bf16.msra.mxu0 0
        %1520 = vmatprep.subr.bf16.mxu0 0
        %1521 = vmatpush1.bf16.msra.mxu0 0
        %1522 = vmatprep.subr.bf16.mxu0 0
        %1523 = vmatpush1.bf16.msra.mxu0 0
        %1524 = vmatprep.subr.bf16.mxu0 0
        %1525 = vmatpush1.bf16.msra.mxu0 0
        %1526 = vmatprep.subr.bf16.mxu0 0
        %1527 = vmatpush1.bf16.msra.mxu0 0
        %1528 = vmatprep.subr.bf16.mxu0 0
        %1529 = vmatpush1.bf16.msra.mxu0 0
        %1530 = vmatprep.subr.bf16.mxu0 0
        %1531 = vmatpush1.bf16.msra.mxu0 0
        %1532 = vmatprep.subr.bf16.mxu0 0
        %1533 = vmatpush1.bf16.msra.mxu0 0
        %1534 = vmatprep.subr.bf16.mxu0 0
        %1535 = vmatpush1.bf16.msra.mxu0 0
        %1536 = vmatprep.subr.bf16.mxu0 0
        %1537 = vmatpush1.bf16.msra.mxu0 0
        %1538 = vmatprep.mubr.bf16.mxu0 0
        %1539 = vmatmul.mubr.bf16.gmra.mrb[0].mxu0 %v1495
        %v1540 = vpop.f32.mrb[0].mxu0
        %v1541 = vadd.f32 0.0, %v1540
        %v1542 = vpop.f32.mrb[0].mxu0
        %v1543 = vpop.f32.mrb[0].mxu0
        %v1544 = vadd.f32 0.0, %v1543
        %v1545 = vpop.f32.mrb[0].mxu0
        %1546 = vmatprep.mubr.bf16.mxu0 0
        %1547 = vmatmul.mubr.bf16.gmra.mrb[0].mxu0 %v1498
        %v1548 = vpop.f32.mrb[0].mxu0
        %v1549 = vadd.f32 0.0, %v1548
        %v1550 = vpop.f32.mrb[0].mxu0
        %v1551 = vpop.f32.mrb[0].mxu0
        %v1552 = vadd.f32 0.0, %v1551
        %v1553 = vpop.f32.mrb[0].mxu0
        %1554 = vmatprep.mubr.bf16.mxu0 0
        %1555 = vmatmul.mubr.bf16.gmra.mrb[0].mxu0 %v1501
        %v1556 = vpop.f32.mrb[0].mxu0
        %v1557 = vadd.f32 0.0, %v1556
        %v1558 = vpop.f32.mrb[0].mxu0
        %v1559 = vpop.f32.mrb[0].mxu0
        %v1560 = vadd.f32 0.0, %v1559
        %v1561 = vpop.f32.mrb[0].mxu0
        %1562 = vmatprep.mubr.bf16.mxu0 0
        %1563 = vmatmul.mubr.bf16.gmra.mrb[0].mxu0 %v1504
        %v1564 = vpop.f32.mrb[0].mxu0
        %v1565 = vadd.f32 0.0, %v1564
        %v1566 = vpop.f32.mrb[0].mxu0
        %v1567 = vpop.f32.mrb[0].mxu0
        %v1568 = vadd.f32 0.0, %v1567
        %v1569 = vpop.f32.mrb[0].mxu0
        %1570 = vdwg.mxu0
        %v1571 = vadd.f32 %v1434, %v1541
        %v1572 = vadd.f32 %v1435, %v1544
        %v1573 = vadd.f32 %v1436, %v1549
        %v1574 = vadd.f32 %v1437, %v1552
        %v1575 = vadd.f32 %v1438, %v1557
        %v1576 = vadd.f32 %v1439, %v1560
        %v1577 = vadd.f32 %v1440, %v1565
        %v1578 = vadd.f32 %v1441, %v1568
        %v1580 = vshrl.u32 %v837, 16
        %v1582 = vrot.slane %v1580, 4
        %v1583 = vshll.u32 %v837, 16
        %v1585 = vrot.slane %v1583, 5
        %v1586 = vor.u32 %v1582, %v1585
        %v1587 = vrot.slane %v1586, 4
        %v1589 = vshll.u32 %v838, 16
        %v1591 = vrot.slane %v1589, 5
        %v1592 = vsel %vm1199, %v1587, %v1591
        %s1593 = scalar_lea.vmem %s4, 224
        %v1594 = vld [vmem:[%s1593] sm:$0xf]
        %v1595 = vld [vmem:[%s1593 + $0x4] sm:$0xf]
        %v1596 = vld [vmem:[%s1593 + $0x8] sm:$0xf]
        %v1597 = vld [vmem:[%s1593 + $0xc] sm:$0xf]
        %v1598 = vld [vmem:[%s1593 + $0x10] sm:$0xf]
        %v1599 = vld [vmem:[%s1593 + $0x14] sm:$0xf]
        %v1600 = vld [vmem:[%s1593 + $0x18] sm:$0xf]
        %v1601 = vld [vmem:[%s1593 + $0x1c] sm:$0xf]
        %v1602 = vunpack.c.l.b16 %v1592
        %v1603 = vpack.c.b16 %v1602, %v1465
        %v1612 = vunpack.c.l.b16 %v1594
        %v1613 = vunpack.c.l.b16 %v1595
        %v1614 = vunpack.c.l.b16 %v1596
        %v1615 = vunpack.c.l.b16 %v1597
        %v1616 = vunpack.c.l.b16 %v1598
        %v1617 = vunpack.c.l.b16 %v1599
        %v1618 = vunpack.c.l.b16 %v1600
        %v1619 = vunpack.c.l.b16 %v1601
        %v1620 = vpack.c.b16 %v1613, %v1612
        %v1621 = vpack.c.b16 %v1615, %v1614
        %v1622 = vpack.c.b16 %v1617, %v1616
        %v1623 = vpack.c.b16 %v1619, %v1618
        %v1629 = vsel %vm900, %v1603, 0
        %1631 = vmatprep.subr.bf16.mxu0 0
        %1632 = vmatpush1.bf16.msra.mxu0 %v1620
        %1633 = vmatprep.subr.bf16.mxu0 0
        %1634 = vmatpush1.bf16.msra.mxu0 %v1621
        %1635 = vmatprep.subr.bf16.mxu0 0
        %1636 = vmatpush1.bf16.msra.mxu0 %v1622
        %1637 = vmatprep.subr.bf16.mxu0 0
        %1638 = vmatpush1.bf16.msra.mxu0 %v1623
        %1639 = vmatprep.subr.bf16.mxu0 0
        %1640 = vmatpush1.bf16.msra.mxu0 0
        %1641 = vmatprep.subr.bf16.mxu0 0
        %1642 = vmatpush1.bf16.msra.mxu0 0
        %1643 = vmatprep.subr.bf16.mxu0 0
        %1644 = vmatpush1.bf16.msra.mxu0 0
        %1645 = vmatprep.subr.bf16.mxu0 0
        %1646 = vmatpush1.bf16.msra.mxu0 0
        %1647 = vmatprep.subr.bf16.mxu0 0
        %1648 = vmatpush1.bf16.msra.mxu0 0
        %1649 = vmatprep.subr.bf16.mxu0 0
        %1650 = vmatpush1.bf16.msra.mxu0 0
        %1651 = vmatprep.subr.bf16.mxu0 0
        %1652 = vmatpush1.bf16.msra.mxu0 0
        %1653 = vmatprep.subr.bf16.mxu0 0
        %1654 = vmatpush1.bf16.msra.mxu0 0
        %1655 = vmatprep.subr.bf16.mxu0 0
        %1656 = vmatpush1.bf16.msra.mxu0 0
        %1657 = vmatprep.subr.bf16.mxu0 0
        %1658 = vmatpush1.bf16.msra.mxu0 0
        %1659 = vmatprep.subr.bf16.mxu0 0
        %1660 = vmatpush1.bf16.msra.mxu0 0
        %1661 = vmatprep.subr.bf16.mxu0 0
        %1662 = vmatpush1.bf16.msra.mxu0 0
        %1663 = vmatprep.mubr.bf16.mxu0 0
        %1664 = vmatmul.mubr.bf16.gmra.mrb[0].mxu0 %v1361
        %v1665 = vpop.f32.mrb[0].mxu0
        %v1666 = vadd.f32 0.0, %v1665
        %v1667 = vpop.f32.mrb[0].mxu0
        %v1668 = vpop.f32.mrb[0].mxu0
        %v1669 = vadd.f32 0.0, %v1668
        %v1670 = vpop.f32.mrb[0].mxu0
        %1671 = vmatprep.mubr.bf16.mxu0 0
        %1672 = vmatmul.mubr.bf16.gmra.mrb[0].mxu0 %v1364
        %v1673 = vpop.f32.mrb[0].mxu0
        %v1674 = vadd.f32 0.0, %v1673
        %v1675 = vpop.f32.mrb[0].mxu0
        %v1676 = vpop.f32.mrb[0].mxu0
        %v1677 = vadd.f32 0.0, %v1676
        %v1678 = vpop.f32.mrb[0].mxu0
        %1679 = vmatprep.mubr.bf16.mxu0 0
        %1680 = vmatmul.mubr.bf16.gmra.mrb[0].mxu0 %v1367
        %v1681 = vpop.f32.mrb[0].mxu0
        %v1682 = vadd.f32 0.0, %v1681
        %v1683 = vpop.f32.mrb[0].mxu0
        %v1684 = vpop.f32.mrb[0].mxu0
        %v1685 = vadd.f32 0.0, %v1684
        %v1686 = vpop.f32.mrb[0].mxu0
        %1687 = vmatprep.mubr.bf16.mxu0 0
        %1688 = vmatmul.mubr.bf16.gmra.mrb[0].mxu0 %v1629
        %v1689 = vpop.f32.mrb[0].mxu0
        %v1690 = vadd.f32 0.0, %v1689
        %v1691 = vpop.f32.mrb[0].mxu0
        %v1692 = vpop.f32.mrb[0].mxu0
        %v1693 = vadd.f32 0.0, %v1692
        %v1694 = vpop.f32.mrb[0].mxu0
        %1695 = vdwg.mxu0
        %v1696 = vadd.f32 %v1571, %v1666
        %v1697 = vadd.f32 %v1572, %v1669
        %v1698 = vadd.f32 %v1573, %v1674
        %v1699 = vadd.f32 %v1574, %v1677
        %v1700 = vadd.f32 %v1575, %v1682
        %v1701 = vadd.f32 %v1576, %v1685
        %v1702 = vadd.f32 %v1577, %v1690
        %v1703 = vadd.f32 %v1578, %v1693
        %vm1712 = vcmask 1042432
        %vm1713 = vcmask 1046532
        %vm1714 = vmor %vm1712, %vm1713
        %v1715 = vrot.slane %v819, 5
        %v1716 = vrot.slane %v1715, 4
        %v1717 = vrot.slane %v820, 5
        %v1718 = vsel %vm1714, %v1716, %v1717
        %v1719 = vrot.slane %v821, 5
        %v1720 = vrot.slane %v1719, 4
        %v1721 = vrot.slane %v822, 5
        %v1722 = vsel %vm1714, %v1720, %v1721
        %v1723 = vrot.slane %v823, 5
        %v1724 = vrot.slane %v1723, 4
        %v1725 = vrot.slane %v824, 5
        %v1726 = vsel %vm1714, %v1724, %v1725
        %v1727 = vrot.slane %v825, 5
        %v1728 = vrot.slane %v1727, 4
        %v1729 = vrot.slane %v826, 5
        %v1730 = vsel %vm1714, %v1728, %v1729
        %v1731 = vrot.slane %v827, 5
        %v1732 = vrot.slane %v1731, 4
        %v1733 = vrot.slane %v828, 5
        %v1734 = vsel %vm1714, %v1732, %v1733
        %v1735 = vrot.slane %v829, 5
        %v1736 = vrot.slane %v1735, 4
        %v1737 = vrot.slane %v830, 5
        %v1738 = vsel %vm1714, %v1736, %v1737
        %v1739 = vrot.slane %v831, 5
        %v1740 = vrot.slane %v1739, 4
        %v1741 = vrot.slane %v832, 5
        %v1742 = vsel %vm1714, %v1740, %v1741
        %v1743 = vrot.slane %v833, 5
        %v1744 = vrot.slane %v1743, 4
        %v1745 = vrot.slane %v834, 5
        %v1746 = vsel %vm1714, %v1744, %v1745
        %s1747 = scalar_lea.vmem %s4, 64
        %v1748 = vld [vmem:[%s1747] sm:$0xf]
        %v1749 = vld [vmem:[%s1747 + $0x4] sm:$0xf]
        %v1750 = vld [vmem:[%s1747 + $0x8] sm:$0xf]
        %v1751 = vld [vmem:[%s1747 + $0xc] sm:$0xf]
        %v1752 = vld [vmem:[%s1747 + $0x10] sm:$0xf]
        %v1753 = vld [vmem:[%s1747 + $0x14] sm:$0xf]
        %v1754 = vld [vmem:[%s1747 + $0x18] sm:$0xf]
        %v1755 = vld [vmem:[%s1747 + $0x1c] sm:$0xf]
        %v1756 = vunpack.c.l.b16 %v1718
        %v1757 = vunpack.c.l.b16 %v1722
        %v1758 = vunpack.c.l.b16 %v1726
        %v1759 = vunpack.c.l.b16 %v1730
        %v1760 = vunpack.c.l.b16 %v1734
        %v1761 = vunpack.c.l.b16 %v1738
        %v1762 = vunpack.c.l.b16 %v1742
        %v1763 = vunpack.c.l.b16 %v1746
        %v1764 = vpack.c.b16 %v1757, %v1756
        %v1765 = vpack.c.b16 %v1759, %v1758
        %v1766 = vpack.c.b16 %v1761, %v1760
        %v1767 = vpack.c.b16 %v1763, %v1762
        %v1776 = vunpack.c.l.b16 %v1748
        %v1777 = vunpack.c.l.b16 %v1749
        %v1778 = vunpack.c.l.b16 %v1750
        %v1779 = vunpack.c.l.b16 %v1751
        %v1780 = vunpack.c.l.b16 %v1752
        %v1781 = vunpack.c.l.b16 %v1753
        %v1782 = vunpack.c.l.b16 %v1754
        %v1783 = vunpack.c.l.b16 %v1755
        %v1784 = vpack.c.b16 %v1777, %v1776
        %v1785 = vpack.c.b16 %v1779, %v1778
        %v1786 = vpack.c.b16 %v1781, %v1780
        %v1787 = vpack.c.b16 %v1783, %v1782
        %v1793 = vsel %vm900, %v1764, 0
        %v1796 = vsel %vm900, %v1765, 0
        %v1799 = vsel %vm900, %v1766, 0
        %v1802 = vsel %vm900, %v1767, 0
        %1804 = vmatprep.subr.bf16.mxu0 0
        %1805 = vmatpush1.bf16.msra.mxu0 %v1784
        %1806 = vmatprep.subr.bf16.mxu0 0
        %1807 = vmatpush1.bf16.msra.mxu0 %v1785
        %1808 = vmatprep.subr.bf16.mxu0 0
        %1809 = vmatpush1.bf16.msra.mxu0 %v1786
        %1810 = vmatprep.subr.bf16.mxu0 0
        %1811 = vmatpush1.bf16.msra.mxu0 %v1787
        %1812 = vmatprep.subr.bf16.mxu0 0
        %1813 = vmatpush1.bf16.msra.mxu0 0
        %1814 = vmatprep.subr.bf16.mxu0 0
        %1815 = vmatpush1.bf16.msra.mxu0 0
        %1816 = vmatprep.subr.bf16.mxu0 0
        %1817 = vmatpush1.bf16.msra.mxu0 0
        %1818 = vmatprep.subr.bf16.mxu0 0
        %1819 = vmatpush1.bf16.msra.mxu0 0
        %1820 = vmatprep.subr.bf16.mxu0 0
        %1821 = vmatpush1.bf16.msra.mxu0 0
        %1822 = vmatprep.subr.bf16.mxu0 0
        %1823 = vmatpush1.bf16.msra.mxu0 0
        %1824 = vmatprep.subr.bf16.mxu0 0
        %1825 = vmatpush1.bf16.msra.mxu0 0
        %1826 = vmatprep.subr.bf16.mxu0 0
        %1827 = vmatpush1.bf16.msra.mxu0 0
        %1828 = vmatprep.subr.bf16.mxu0 0
        %1829 = vmatpush1.bf16.msra.mxu0 0
        %1830 = vmatprep.subr.bf16.mxu0 0
        %1831 = vmatpush1.bf16.msra.mxu0 0
        %1832 = vmatprep.subr.bf16.mxu0 0
        %1833 = vmatpush1.bf16.msra.mxu0 0
        %1834 = vmatprep.subr.bf16.mxu0 0
        %1835 = vmatpush1.bf16.msra.mxu0 0
        %1836 = vmatprep.mubr.bf16.mxu0 0
        %1837 = vmatmul.mubr.bf16.gmra.mrb[0].mxu0 %v1793
        %v1838 = vpop.f32.mrb[0].mxu0
        %v1839 = vadd.f32 0.0, %v1838
        %v1840 = vpop.f32.mrb[0].mxu0
        %v1841 = vpop.f32.mrb[0].mxu0
        %v1842 = vadd.f32 0.0, %v1841
        %v1843 = vpop.f32.mrb[0].mxu0
        %1844 = vmatprep.mubr.bf16.mxu0 0
        %1845 = vmatmul.mubr.bf16.gmra.mrb[0].mxu0 %v1796
        %v1846 = vpop.f32.mrb[0].mxu0
        %v1847 = vadd.f32 0.0, %v1846
        %v1848 = vpop.f32.mrb[0].mxu0
        %v1849 = vpop.f32.mrb[0].mxu0
        %v1850 = vadd.f32 0.0, %v1849
        %v1851 = vpop.f32.mrb[0].mxu0
        %1852 = vmatprep.mubr.bf16.mxu0 0
        %1853 = vmatmul.mubr.bf16.gmra.mrb[0].mxu0 %v1799
        %v1854 = vpop.f32.mrb[0].mxu0
        %v1855 = vadd.f32 0.0, %v1854
        %v1856 = vpop.f32.mrb[0].mxu0
        %v1857 = vpop.f32.mrb[0].mxu0
        %v1858 = vadd.f32 0.0, %v1857
        %v1859 = vpop.f32.mrb[0].mxu0
        %1860 = vmatprep.mubr.bf16.mxu0 0
        %1861 = vmatmul.mubr.bf16.gmra.mrb[0].mxu0 %v1802
        %v1862 = vpop.f32.mrb[0].mxu0
        %v1863 = vadd.f32 0.0, %v1862
        %v1864 = vpop.f32.mrb[0].mxu0
        %v1865 = vpop.f32.mrb[0].mxu0
        %v1866 = vadd.f32 0.0, %v1865
        %v1867 = vpop.f32.mrb[0].mxu0
        %1868 = vdwg.mxu0
        %v1869 = vadd.f32 %v1696, %v1839
        %v1870 = vadd.f32 %v1697, %v1842
        %v1871 = vadd.f32 %v1698, %v1847
        %v1872 = vadd.f32 %v1699, %v1850
        %v1873 = vadd.f32 %v1700, %v1855
        %v1874 = vadd.f32 %v1701, %v1858
        %v1875 = vadd.f32 %v1702, %v1863
        %v1876 = vadd.f32 %v1703, %v1866
        %v1878 = vrot.slane %v835, 5
        %v1879 = vrot.slane %v1878, 4
        %v1880 = vrot.slane %v836, 5
        %v1881 = vsel %vm1714, %v1879, %v1880
        %s1882 = scalar_lea.vmem %s4, 160
        %v1883 = vld [vmem:[%s1882] sm:$0xf]
        %v1884 = vld [vmem:[%s1882 + $0x4] sm:$0xf]
        %v1885 = vld [vmem:[%s1882 + $0x8] sm:$0xf]
        %v1886 = vld [vmem:[%s1882 + $0xc] sm:$0xf]
        %v1887 = vld [vmem:[%s1882 + $0x10] sm:$0xf]
        %v1888 = vld [vmem:[%s1882 + $0x14] sm:$0xf]
        %v1889 = vld [vmem:[%s1882 + $0x18] sm:$0xf]
        %v1890 = vld [vmem:[%s1882 + $0x1c] sm:$0xf]
        %v1891 = vunpack.c.l.b16 %v1881
        %v1892 = vpack.c.b16 %v1758, %v1757
        %v1893 = vpack.c.b16 %v1760, %v1759
        %v1894 = vpack.c.b16 %v1762, %v1761
        %v1895 = vpack.c.b16 %v1891, %v1763
        %v1904 = vunpack.c.l.b16 %v1883
        %v1905 = vunpack.c.l.b16 %v1884
        %v1906 = vunpack.c.l.b16 %v1885
        %v1907 = vunpack.c.l.b16 %v1886
        %v1908 = vunpack.c.l.b16 %v1887
        %v1909 = vunpack.c.l.b16 %v1888
        %v1910 = vunpack.c.l.b16 %v1889
        %v1911 = vunpack.c.l.b16 %v1890
        %v1912 = vpack.c.b16 %v1905, %v1904
        %v1913 = vpack.c.b16 %v1907, %v1906
        %v1914 = vpack.c.b16 %v1909, %v1908
        %v1915 = vpack.c.b16 %v1911, %v1910
        %v1921 = vsel %vm900, %v1892, 0
        %v1924 = vsel %vm900, %v1893, 0
        %v1927 = vsel %vm900, %v1894, 0
        %v1930 = vsel %vm900, %v1895, 0
        %1932 = vmatprep.subr.bf16.mxu0 0
        %1933 = vmatpush1.bf16.msra.mxu0 %v1912
        %1934 = vmatprep.subr.bf16.mxu0 0
        %1935 = vmatpush1.bf16.msra.mxu0 %v1913
        %1936 = vmatprep.subr.bf16.mxu0 0
        %1937 = vmatpush1.bf16.msra.mxu0 %v1914
        %1938 = vmatprep.subr.bf16.mxu0 0
        %1939 = vmatpush1.bf16.msra.mxu0 %v1915
        %1940 = vmatprep.subr.bf16.mxu0 0
        %1941 = vmatpush1.bf16.msra.mxu0 0
        %1942 = vmatprep.subr.bf16.mxu0 0
        %1943 = vmatpush1.bf16.msra.mxu0 0
        %1944 = vmatprep.subr.bf16.mxu0 0
        %1945 = vmatpush1.bf16.msra.mxu0 0
        %1946 = vmatprep.subr.bf16.mxu0 0
        %1947 = vmatpush1.bf16.msra.mxu0 0
        %1948 = vmatprep.subr.bf16.mxu0 0
        %1949 = vmatpush1.bf16.msra.mxu0 0
        %1950 = vmatprep.subr.bf16.mxu0 0
        %1951 = vmatpush1.bf16.msra.mxu0 0
        %1952 = vmatprep.subr.bf16.mxu0 0
        %1953 = vmatpush1.bf16.msra.mxu0 0
        %1954 = vmatprep.subr.bf16.mxu0 0
        %1955 = vmatpush1.bf16.msra.mxu0 0
        %1956 = vmatprep.subr.bf16.mxu0 0
        %1957 = vmatpush1.bf16.msra.mxu0 0
        %1958 = vmatprep.subr.bf16.mxu0 0
        %1959 = vmatpush1.bf16.msra.mxu0 0
        %1960 = vmatprep.subr.bf16.mxu0 0
        %1961 = vmatpush1.bf16.msra.mxu0 0
        %1962 = vmatprep.subr.bf16.mxu0 0
        %1963 = vmatpush1.bf16.msra.mxu0 0
        %1964 = vmatprep.mubr.bf16.mxu0 0
        %1965 = vmatmul.mubr.bf16.gmra.mrb[0].mxu0 %v1921
        %v1966 = vpop.f32.mrb[0].mxu0
        %v1967 = vadd.f32 0.0, %v1966
        %v1968 = vpop.f32.mrb[0].mxu0
        %v1969 = vpop.f32.mrb[0].mxu0
        %v1970 = vadd.f32 0.0, %v1969
        %v1971 = vpop.f32.mrb[0].mxu0
        %1972 = vmatprep.mubr.bf16.mxu0 0
        %1973 = vmatmul.mubr.bf16.gmra.mrb[0].mxu0 %v1924
        %v1974 = vpop.f32.mrb[0].mxu0
        %v1975 = vadd.f32 0.0, %v1974
        %v1976 = vpop.f32.mrb[0].mxu0
        %v1977 = vpop.f32.mrb[0].mxu0
        %v1978 = vadd.f32 0.0, %v1977
        %v1979 = vpop.f32.mrb[0].mxu0
        %1980 = vmatprep.mubr.bf16.mxu0 0
        %1981 = vmatmul.mubr.bf16.gmra.mrb[0].mxu0 %v1927
        %v1982 = vpop.f32.mrb[0].mxu0
        %v1983 = vadd.f32 0.0, %v1982
        %v1984 = vpop.f32.mrb[0].mxu0
        %v1985 = vpop.f32.mrb[0].mxu0
        %v1986 = vadd.f32 0.0, %v1985
        %v1987 = vpop.f32.mrb[0].mxu0
        %1988 = vmatprep.mubr.bf16.mxu0 0
        %1989 = vmatmul.mubr.bf16.gmra.mrb[0].mxu0 %v1930
        %v1990 = vpop.f32.mrb[0].mxu0
        %v1991 = vadd.f32 0.0, %v1990
        %v1992 = vpop.f32.mrb[0].mxu0
        %v1993 = vpop.f32.mrb[0].mxu0
        %v1994 = vadd.f32 0.0, %v1993
        %v1995 = vpop.f32.mrb[0].mxu0
        %1996 = vdwg.mxu0
        %v1997 = vadd.f32 %v1869, %v1967
        %v1998 = vadd.f32 %v1870, %v1970
        %v1999 = vadd.f32 %v1871, %v1975
        %v2000 = vadd.f32 %v1872, %v1978
        %v2001 = vadd.f32 %v1873, %v1983
        %v2002 = vadd.f32 %v1874, %v1986
        %v2003 = vadd.f32 %v1875, %v1991
        %v2004 = vadd.f32 %v1876, %v1994
        %v2006 = vrot.slane %v837, 5
        %v2007 = vrot.slane %v2006, 4
        %v2008 = vrot.slane %v838, 5
        %v2009 = vsel %vm1714, %v2007, %v2008
        %s2010 = scalar_lea.vmem %s4, 256
        %v2011 = vld [vmem:[%s2010] sm:$0xf]
        %v2012 = vld [vmem:[%s2010 + $0x4] sm:$0xf]
        %v2013 = vld [vmem:[%s2010 + $0x8] sm:$0xf]
        %v2014 = vld [vmem:[%s2010 + $0xc] sm:$0xf]
        %v2015 = vld [vmem:[%s2010 + $0x10] sm:$0xf]
        %v2016 = vld [vmem:[%s2010 + $0x14] sm:$0xf]
        %v2017 = vld [vmem:[%s2010 + $0x18] sm:$0xf]
        %v2018 = vld [vmem:[%s2010 + $0x1c] sm:$0xf]
        %v2019 = vunpack.c.l.b16 %v2009
        %v2020 = vpack.c.b16 %v2019, %v1891
        %v2029 = vunpack.c.l.b16 %v2011
        %v2030 = vunpack.c.l.b16 %v2012
        %v2031 = vunpack.c.l.b16 %v2013
        %v2032 = vunpack.c.l.b16 %v2014
        %v2033 = vunpack.c.l.b16 %v2015
        %v2034 = vunpack.c.l.b16 %v2016
        %v2035 = vunpack.c.l.b16 %v2017
        %v2036 = vunpack.c.l.b16 %v2018
        %v2037 = vpack.c.b16 %v2030, %v2029
        %v2038 = vpack.c.b16 %v2032, %v2031
        %v2039 = vpack.c.b16 %v2034, %v2033
        %v2040 = vpack.c.b16 %v2036, %v2035
        %v2046 = vsel %vm900, %v2020, 0
        %2048 = vmatprep.subr.bf16.mxu0 0
        %2049 = vmatpush1.bf16.msra.mxu0 %v2037
        %2050 = vmatprep.subr.bf16.mxu0 0
        %2051 = vmatpush1.bf16.msra.mxu0 %v2038
        %2052 = vmatprep.subr.bf16.mxu0 0
        %2053 = vmatpush1.bf16.msra.mxu0 %v2039
        %2054 = vmatprep.subr.bf16.mxu0 0
        %2055 = vmatpush1.bf16.msra.mxu0 %v2040
        %2056 = vmatprep.subr.bf16.mxu0 0
        %2057 = vmatpush1.bf16.msra.mxu0 0
        %2058 = vmatprep.subr.bf16.mxu0 0
        %2059 = vmatpush1.bf16.msra.mxu0 0
        %2060 = vmatprep.subr.bf16.mxu0 0
        %2061 = vmatpush1.bf16.msra.mxu0 0
        %2062 = vmatprep.subr.bf16.mxu0 0
        %2063 = vmatpush1.bf16.msra.mxu0 0
        %2064 = vmatprep.subr.bf16.mxu0 0
        %2065 = vmatpush1.bf16.msra.mxu0 0
        %2066 = vmatprep.subr.bf16.mxu0 0
        %2067 = vmatpush1.bf16.msra.mxu0 0
        %2068 = vmatprep.subr.bf16.mxu0 0
        %2069 = vmatpush1.bf16.msra.mxu0 0
        %2070 = vmatprep.subr.bf16.mxu0 0
        %2071 = vmatpush1.bf16.msra.mxu0 0
        %2072 = vmatprep.subr.bf16.mxu0 0
        %2073 = vmatpush1.bf16.msra.mxu0 0
        %2074 = vmatprep.subr.bf16.mxu0 0
        %2075 = vmatpush1.bf16.msra.mxu0 0
        %2076 = vmatprep.subr.bf16.mxu0 0
        %2077 = vmatpush1.bf16.msra.mxu0 0
        %2078 = vmatprep.subr.bf16.mxu0 0
        %2079 = vmatpush1.bf16.msra.mxu0 0
        %2080 = vmatprep.mubr.bf16.mxu0 0
        %2081 = vmatmul.mubr.bf16.gmra.mrb[0].mxu0 %v1796
        %v2082 = vpop.f32.mrb[0].mxu0
        %v2083 = vadd.f32 0.0, %v2082
        %v2084 = vpop.f32.mrb[0].mxu0
        %v2085 = vpop.f32.mrb[0].mxu0
        %v2086 = vadd.f32 0.0, %v2085
        %v2087 = vpop.f32.mrb[0].mxu0
        %2088 = vmatprep.mubr.bf16.mxu0 0
        %2089 = vmatmul.mubr.bf16.gmra.mrb[0].mxu0 %v1799
        %v2090 = vpop.f32.mrb[0].mxu0
        %v2091 = vadd.f32 0.0, %v2090
        %v2092 = vpop.f32.mrb[0].mxu0
        %v2093 = vpop.f32.mrb[0].mxu0
        %v2094 = vadd.f32 0.0, %v2093
        %v2095 = vpop.f32.mrb[0].mxu0
        %2096 = vmatprep.mubr.bf16.mxu0 0
        %2097 = vmatmul.mubr.bf16.gmra.mrb[0].mxu0 %v1802
        %v2098 = vpop.f32.mrb[0].mxu0
        %v2099 = vadd.f32 0.0, %v2098
        %v2100 = vpop.f32.mrb[0].mxu0
        %v2101 = vpop.f32.mrb[0].mxu0
        %v2102 = vadd.f32 0.0, %v2101
        %v2103 = vpop.f32.mrb[0].mxu0
        %2104 = vmatprep.mubr.bf16.mxu0 0
        %2105 = vmatmul.mubr.bf16.gmra.mrb[0].mxu0 %v2046
        %v2106 = vpop.f32.mrb[0].mxu0
        %v2107 = vadd.f32 0.0, %v2106
        %v2108 = vpop.f32.mrb[0].mxu0
        %v2109 = vpop.f32.mrb[0].mxu0
        %v2110 = vadd.f32 0.0, %v2109
        %v2111 = vpop.f32.mrb[0].mxu0
        %2112 = vdwg.mxu0
        %v2113 = vadd.f32 %v1997, %v2083
        %v2114 = vadd.f32 %v1998, %v2086
        %v2115 = vadd.f32 %v1999, %v2091
        %v2116 = vadd.f32 %v2000, %v2094
        %v2117 = vadd.f32 %v2001, %v2099
        %v2118 = vadd.f32 %v2002, %v2102
        %v2119 = vadd.f32 %v2003, %v2107
        %v2120 = vadd.f32 %v2004, %v2110
        %v2121 = vld [vmem:[%s5] sm:$0x1]
        %v2123 = vlaneseq
        %v2124 = vshrl.u32 %v2123, 7
        %v2125 = vsub.s32 0, %v2124
        %v2126 = vrot.slane %v2121, %v2125
        %v2128 = vmul.f32 %v2113, %v2126
        %v2129 = vmul.f32 %v2114, %v2126
        %v2130 = vmul.f32 %v2115, %v2126
        %v2131 = vmul.f32 %v2116, %v2126
        %v2132 = vmul.f32 %v2117, %v2126
        %v2133 = vmul.f32 %v2118, %v2126
        %v2134 = vmul.f32 %v2119, %v2126
        %v2135 = vmul.f32 %v2120, %v2126
        %v2136 = vld [vmem:[%s6] sm:$0x1]
        %v2138 = vlaneseq
        %v2139 = vshrl.u32 %v2138, 7
        %v2140 = vsub.s32 0, %v2139
        %v2141 = vrot.slane %v2136, %v2140
        %v2143 = vadd.f32 %v2128, %v2141
        %v2144 = vadd.f32 %v2129, %v2141
        %v2145 = vadd.f32 %v2130, %v2141
        %v2146 = vadd.f32 %v2131, %v2141
        %v2147 = vadd.f32 %v2132, %v2141
        %v2148 = vadd.f32 %v2133, %v2141
        %v2149 = vadd.f32 %v2134, %v2141
        %v2150 = vadd.f32 %v2135, %v2141
        %v2151 = vmax.f32 %v2143, 0.0
        %v2152 = vmax.f32 %v2144, 0.0
        %v2153 = vmax.f32 %v2145, 0.0
        %v2154 = vmax.f32 %v2146, 0.0
        %v2155 = vmax.f32 %v2147, 0.0
        %v2156 = vmax.f32 %v2148, 0.0
        %v2157 = vmax.f32 %v2149, 0.0
        %v2158 = vmax.f32 %v2150, 0.0
        %v2159 = vpack.c.bf16 %v2152, %v2151
        %v2160 = vpack.c.bf16 %v2154, %v2153
        %v2161 = vpack.c.bf16 %v2156, %v2155
        %v2162 = vpack.c.bf16 %v2158, %v2157
        %v2163 = vld [vmem:[%s7] sm:$0xff]
        %v2164 = vld [vmem:[%s7 + $0x8] sm:$0xff]
        %v2165 = vld [vmem:[%s7 + $0x10] sm:$0xff]
        %v2166 = vld [vmem:[%s7 + $0x18] sm:$0xff]
        %v2167 = vld [vmem:[%s7 + $0x20] sm:$0xff]
        %v2168 = vld [vmem:[%s7 + $0x28] sm:$0xff]
        %v2169 = vld [vmem:[%s7 + $0x30] sm:$0xff]
        %v2170 = vld [vmem:[%s7 + $0x38] sm:$0xff]
        %v2179 = vunpack.c.l.b16 %v2163
        %v2180 = vunpack.c.h.b16 %v2163
        %v2181 = vunpack.c.l.b16 %v2164
        %v2182 = vunpack.c.h.b16 %v2164
        %v2183 = vunpack.c.l.b16 %v2165
        %v2184 = vunpack.c.h.b16 %v2165
        %v2185 = vunpack.c.l.b16 %v2166
        %v2186 = vunpack.c.h.b16 %v2166
        %v2187 = vunpack.c.l.b16 %v2167
        %v2188 = vunpack.c.h.b16 %v2167
        %v2189 = vunpack.c.l.b16 %v2168
        %v2190 = vunpack.c.h.b16 %v2168
        %v2191 = vunpack.c.l.b16 %v2169
        %v2192 = vunpack.c.h.b16 %v2169
        %v2193 = vunpack.c.l.b16 %v2170
        %v2194 = vunpack.c.h.b16 %v2170
        %v2195 = vpack.c.b16 %v2181, %v2179
        %v2196 = vpack.c.b16 %v2182, %v2180
        %v2197 = vpack.c.b16 %v2185, %v2183
        %v2198 = vpack.c.b16 %v2186, %v2184
        %v2199 = vpack.c.b16 %v2189, %v2187
        %v2200 = vpack.c.b16 %v2190, %v2188
        %v2201 = vpack.c.b16 %v2193, %v2191
        %v2202 = vpack.c.b16 %v2194, %v2192
        %v2212 = vsel %vm900, %v2159, 0
        %v2215 = vsel %vm900, %v2160, 0
        %v2218 = vsel %vm900, %v2161, 0
        %v2221 = vsel %vm900, %v2162, 0
        %2223 = vmatprep.subr.bf16.mxu0 %v2196
        %2224 = vmatpush1.bf16.msra.mxu0 %v2195
        %2225 = vmatprep.subr.bf16.mxu0 %v2198
        %2226 = vmatpush1.bf16.msra.mxu0 %v2197
        %2227 = vmatprep.subr.bf16.mxu0 %v2200
        %2228 = vmatpush1.bf16.msra.mxu0 %v2199
        %2229 = vmatprep.subr.bf16.mxu0 %v2202
        %2230 = vmatpush1.bf16.msra.mxu0 %v2201
        %2231 = vmatprep.subr.bf16.mxu0 0
        %2232 = vmatpush1.bf16.msra.mxu0 0
        %2233 = vmatprep.subr.bf16.mxu0 0
        %2234 = vmatpush1.bf16.msra.mxu0 0
        %2235 = vmatprep.subr.bf16.mxu0 0
        %2236 = vmatpush1.bf16.msra.mxu0 0
        %2237 = vmatprep.subr.bf16.mxu0 0
        %2238 = vmatpush1.bf16.msra.mxu0 0
        %2239 = vmatprep.subr.bf16.mxu0 0
        %2240 = vmatpush1.bf16.msra.mxu0 0
        %2241 = vmatprep.subr.bf16.mxu0 0
        %2242 = vmatpush1.bf16.msra.mxu0 0
        %2243 = vmatprep.subr.bf16.mxu0 0
        %2244 = vmatpush1.bf16.msra.mxu0 0
        %2245 = vmatprep.subr.bf16.mxu0 0
        %2246 = vmatpush1.bf16.msra.mxu0 0
        %2247 = vmatprep.subr.bf16.mxu0 0
        %2248 = vmatpush1.bf16.msra.mxu0 0
        %2249 = vmatprep.subr.bf16.mxu0 0
        %2250 = vmatpush1.bf16.msra.mxu0 0
        %2251 = vmatprep.subr.bf16.mxu0 0
        %2252 = vmatpush1.bf16.msra.mxu0 0
        %2253 = vmatprep.subr.bf16.mxu0 0
        %2254 = vmatpush1.bf16.msra.mxu0 0
        %2255 = vmatprep.mubr.bf16.mxu0 0
        %2256 = vmatmul.mubr.bf16.gmra.mrb[0].mxu0 %v2212
        %v2257 = vpop.f32.mrb[0].mxu0
        %v2258 = vadd.f32 0.0, %v2257
        %v2259 = vpop.f32.mrb[0].mxu0
        %v2260 = vadd.f32 0.0, %v2259
        %v2261 = vpop.f32.mrb[0].mxu0
        %v2262 = vadd.f32 0.0, %v2261
        %v2263 = vpop.f32.mrb[0].mxu0
        %v2264 = vadd.f32 0.0, %v2263
        %2265 = vmatprep.mubr.bf16.mxu0 0
        %2266 = vmatmul.mubr.bf16.gmra.mrb[0].mxu0 %v2215
        %v2267 = vpop.f32.mrb[0].mxu0
        %v2268 = vadd.f32 0.0, %v2267
        %v2269 = vpop.f32.mrb[0].mxu0
        %v2270 = vadd.f32 0.0, %v2269
        %v2271 = vpop.f32.mrb[0].mxu0
        %v2272 = vadd.f32 0.0, %v2271
        %v2273 = vpop.f32.mrb[0].mxu0
        %v2274 = vadd.f32 0.0, %v2273
        %2275 = vmatprep.mubr.bf16.mxu0 0
        %2276 = vmatmul.mubr.bf16.gmra.mrb[0].mxu0 %v2218
        %v2277 = vpop.f32.mrb[0].mxu0
        %v2278 = vadd.f32 0.0, %v2277
        %v2279 = vpop.f32.mrb[0].mxu0
        %v2280 = vadd.f32 0.0, %v2279
        %v2281 = vpop.f32.mrb[0].mxu0
        %v2282 = vadd.f32 0.0, %v2281
        %v2283 = vpop.f32.mrb[0].mxu0
        %v2284 = vadd.f32 0.0, %v2283
        %2285 = vmatprep.mubr.bf16.mxu0 0
        %2286 = vmatmul.mubr.bf16.gmra.mrb[0].mxu0 %v2221
        %v2287 = vpop.f32.mrb[0].mxu0
        %v2288 = vadd.f32 0.0, %v2287
        %v2289 = vpop.f32.mrb[0].mxu0
        %v2290 = vadd.f32 0.0, %v2289
        %v2291 = vpop.f32.mrb[0].mxu0
        %v2292 = vadd.f32 0.0, %v2291
        %v2293 = vpop.f32.mrb[0].mxu0
        %v2294 = vadd.f32 0.0, %v2293
        %2295 = vdwg.mxu0
        %v2296 = vld [vmem:[%s8] sm:$0x3]
        %v2298 = vlaneseq
        %v2299 = vshrl.u32 %v2298, 7
        %v2300 = vsub.s32 0, %v2299
        %v2301 = vrot.slane %v2296, %v2300
        %v2302 = vlaneseq
        %v2303 = vshrl.u32 %v2302, 7
        %v2304 = vsub.s32 1, %v2303
        %v2305 = vrot.slane %v2296, %v2304
        %v2308 = vmul.f32 %v2258, %v2301
        %v2309 = vmul.f32 %v2260, %v2305
        %v2310 = vmul.f32 %v2262, %v2301
        %v2311 = vmul.f32 %v2264, %v2305
        %v2312 = vmul.f32 %v2268, %v2301
        %v2313 = vmul.f32 %v2270, %v2305
        %v2314 = vmul.f32 %v2272, %v2301
        %v2315 = vmul.f32 %v2274, %v2305
        %v2316 = vmul.f32 %v2278, %v2301
        %v2317 = vmul.f32 %v2280, %v2305
        %v2318 = vmul.f32 %v2282, %v2301
        %v2319 = vmul.f32 %v2284, %v2305
        %v2320 = vmul.f32 %v2288, %v2301
        %v2321 = vmul.f32 %v2290, %v2305
        %v2322 = vmul.f32 %v2292, %v2301
        %v2323 = vmul.f32 %v2294, %v2305
        %v2324 = vld [vmem:[%s9] sm:$0x3]
        %v2326 = vlaneseq
        %v2327 = vshrl.u32 %v2326, 7
        %v2328 = vsub.s32 0, %v2327
        %v2329 = vrot.slane %v2324, %v2328
        %v2330 = vlaneseq
        %v2331 = vshrl.u32 %v2330, 7
        %v2332 = vsub.s32 1, %v2331
        %v2333 = vrot.slane %v2324, %v2332
        %v2336 = vadd.f32 %v2308, %v2329
        %v2337 = vadd.f32 %v2309, %v2333
        %v2338 = vadd.f32 %v2310, %v2329
        %v2339 = vadd.f32 %v2311, %v2333
        %v2340 = vadd.f32 %v2312, %v2329
        %v2341 = vadd.f32 %v2313, %v2333
        %v2342 = vadd.f32 %v2314, %v2329
        %v2343 = vadd.f32 %v2315, %v2333
        %v2344 = vadd.f32 %v2316, %v2329
        %v2345 = vadd.f32 %v2317, %v2333
        %v2346 = vadd.f32 %v2318, %v2329
        %v2347 = vadd.f32 %v2319, %v2333
        %v2348 = vadd.f32 %v2320, %v2329
        %v2349 = vadd.f32 %v2321, %v2333
        %v2350 = vadd.f32 %v2322, %v2329
        %v2351 = vadd.f32 %v2323, %v2333
        %v2352 = vunpack.c.l.bf16 %v359
        %v2353 = vunpack.c.h.bf16 %v359
        %v2354 = vunpack.c.l.bf16 %v360
        %v2355 = vunpack.c.h.bf16 %v360
        %v2356 = vunpack.c.l.bf16 %v361
        %v2357 = vunpack.c.h.bf16 %v361
        %v2358 = vunpack.c.l.bf16 %v362
        %v2359 = vunpack.c.h.bf16 %v362
        %v2360 = vunpack.c.l.bf16 %v363
        %v2361 = vunpack.c.h.bf16 %v363
        %v2362 = vunpack.c.l.bf16 %v364
        %v2363 = vunpack.c.h.bf16 %v364
        %v2364 = vunpack.c.l.bf16 %v365
        %v2365 = vunpack.c.h.bf16 %v365
        %v2366 = vunpack.c.l.bf16 %v366
        %v2367 = vunpack.c.h.bf16 %v366
        %v2368 = vadd.f32 %v2336, %v2352
        %v2369 = vadd.f32 %v2337, %v2353
        %v2370 = vadd.f32 %v2338, %v2354
        %v2371 = vadd.f32 %v2339, %v2355
        %v2372 = vadd.f32 %v2340, %v2356
        %v2373 = vadd.f32 %v2341, %v2357
        %v2374 = vadd.f32 %v2342, %v2358
        %v2375 = vadd.f32 %v2343, %v2359
        %v2376 = vadd.f32 %v2344, %v2360
        %v2377 = vadd.f32 %v2345, %v2361
        %v2378 = vadd.f32 %v2346, %v2362
        %v2379 = vadd.f32 %v2347, %v2363
        %v2380 = vadd.f32 %v2348, %v2364
        %v2381 = vadd.f32 %v2349, %v2365
        %v2382 = vadd.f32 %v2350, %v2366
        %v2383 = vadd.f32 %v2351, %v2367
        %v2384 = vmax.f32 %v2368, 0.0
        %v2385 = vmax.f32 %v2369, 0.0
        %v2386 = vmax.f32 %v2370, 0.0
        %v2387 = vmax.f32 %v2371, 0.0
        %v2388 = vmax.f32 %v2372, 0.0
        %v2389 = vmax.f32 %v2373, 0.0
        %v2390 = vmax.f32 %v2374, 0.0
        %v2391 = vmax.f32 %v2375, 0.0
        %v2392 = vmax.f32 %v2376, 0.0
        %v2393 = vmax.f32 %v2377, 0.0
        %v2394 = vmax.f32 %v2378, 0.0
        %v2395 = vmax.f32 %v2379, 0.0
        %v2396 = vmax.f32 %v2380, 0.0
        %v2397 = vmax.f32 %v2381, 0.0
        %v2398 = vmax.f32 %v2382, 0.0
        %v2399 = vmax.f32 %v2383, 0.0
        %v2400 = vpack.c.bf16 %v2384, %v2384
        %v2401 = vpack.c.bf16 %v2385, %v2385
        %v2402 = vpack.c.bf16 %v2386, %v2386
        %v2403 = vpack.c.bf16 %v2387, %v2387
        %v2404 = vpack.c.bf16 %v2388, %v2388
        %v2405 = vpack.c.bf16 %v2389, %v2389
        %v2406 = vpack.c.bf16 %v2390, %v2390
        %v2407 = vpack.c.bf16 %v2391, %v2391
        %v2408 = vpack.c.bf16 %v2392, %v2392
        %v2409 = vpack.c.bf16 %v2393, %v2393
        %v2410 = vpack.c.bf16 %v2394, %v2394
        %v2411 = vpack.c.bf16 %v2395, %v2395
        %v2412 = vpack.c.bf16 %v2396, %v2396
        %v2413 = vpack.c.bf16 %v2397, %v2397
        %v2414 = vpack.c.bf16 %v2398, %v2398
        %v2415 = vpack.c.bf16 %v2399, %v2399
        %v2432 = vunpack.c.l.b16 %v2400
        %v2433 = vunpack.c.l.b16 %v2401
        %v2434 = vunpack.c.l.b16 %v2402
        %v2435 = vunpack.c.l.b16 %v2403
        %v2436 = vunpack.c.l.b16 %v2404
        %v2437 = vunpack.c.l.b16 %v2405
        %v2438 = vunpack.c.l.b16 %v2406
        %v2439 = vunpack.c.l.b16 %v2407
        %v2440 = vunpack.c.l.b16 %v2408
        %v2441 = vunpack.c.l.b16 %v2409
        %v2442 = vunpack.c.l.b16 %v2410
        %v2443 = vunpack.c.l.b16 %v2411
        %v2444 = vunpack.c.l.b16 %v2412
        %v2445 = vunpack.c.l.b16 %v2413
        %v2446 = vunpack.c.l.b16 %v2414
        %v2447 = vunpack.c.l.b16 %v2415
        %v2448 = vpack.c.b16 %v2433, %v2432
        %v2449 = vpack.c.b16 %v2435, %v2434
        %v2450 = vpack.c.b16 %v2437, %v2436
        %v2451 = vpack.c.b16 %v2439, %v2438
        %v2452 = vpack.c.b16 %v2441, %v2440
        %v2453 = vpack.c.b16 %v2443, %v2442
        %v2454 = vpack.c.b16 %v2445, %v2444
        %v2455 = vpack.c.b16 %v2447, %v2446
        %2464 = vst [vmem:[%s352] sm:$0xff] %v2448
        %2465 = vst [vmem:[%s352 + $0x8] sm:$0xff] %v2449
        %2466 = vst [vmem:[%s352 + $0x10] sm:$0xff] %v2450
        %2467 = vst [vmem:[%s352 + $0x18] sm:$0xff] %v2451
        %2468 = vst [vmem:[%s352 + $0x20] sm:$0xff] %v2452
        %2469 = vst [vmem:[%s352 + $0x28] sm:$0xff] %v2453
        %2470 = vst [vmem:[%s352 + $0x30] sm:$0xff] %v2454
        %2471 = vst [vmem:[%s352 + $0x38] sm:$0xff] %v2455
        %s2472 = sand.u32 %s247, 1
        %s2473 = scalar_lea.sflag [#allocation4], %s2472
        %s2474 = sand.u32 %s247, 1
        %s2475 = smul.addr %s2474, 64
        %s2476 = scalar_lea.vmem [#allocation3], %s2475
        // Predicated region
        $region61: #{bottleneck_forward.1} parent=59 // pred_check
          %p2477 = pneg %p257
        $region62: #{bottleneck_forward.1} parent=59 // pred_check_branch
          %2479 = sbr.rel (%p2477) target = $region64
        $region63: #{bottleneck_forward.1} parent=59 // pred_region
          %s2481 = ssub.s32 1024, 1024
          %2482 = vsyncadd %s2473, %s2481
          %s2483 = smul.addr %s24, 16
          %s2484 = smul.addr %s2483, 64
          %s2485 = scalar_lea.hbm %s10, %s2484
          %s2486 = sshll.u32 %s2476, 4
          %s2487 = int_to_ptr.vmem [resolvable:$true] %s2486
          %2492 = dma.vmem_to_hbm [thread:$0]  %s2487, 1024, %s2485, %s2473, 128, 128, 8
        $region64: #{bottleneck_forward.1} parent=59 // pred_fallthru
          _
      $region60: #{bottleneck_forward.1} parent=5 // pred_fallthru
        _
      %p2493 = scmp.le.s32.totalorder 2, %s19
      // Predicated region
      $region65: #{bottleneck_forward.1} parent=5 // pred_check
        %p2494 = pneg %p2493
      $region66: #{bottleneck_forward.1} parent=5 // pred_check_branch
        %2496 = sbr.rel (%p2494) target = $region68
      $region67: #{bottleneck_forward.1} parent=5 // pred_region
        %s2497 = ssub.s32 %s19, 2
        // Predicated region
        $region69: #{bottleneck_forward.1} parent=67 // pred_check
          %p2498 = pneg %p263
        $region70: #{bottleneck_forward.1} parent=67 // pred_check_branch
          %2500 = sbr.rel (%p2498) target = $region72
        $region71: #{bottleneck_forward.1} parent=67 // pred_region
          %s2501 = sand.u32 %s248, 1
          %s2502 = scalar_lea.sflag [#allocation4], %s2501
          %s2503 = sand.u32 %s248, 1
          %s2504 = smul.addr %s2503, 64
          %s2505 = scalar_lea.vmem [#allocation3], %s2504
          %2506 = dma.done %s2502, 1024
        $region72: #{bottleneck_forward.1} parent=67 // pred_fallthru
          _
      $region68: #{bottleneck_forward.1} parent=5 // pred_fallthru
        _
    $region6: #{bottleneck_forward.1} parent=1 // loop_footer
      %s23 = sadd.s32 1, %s19
    $region7: #{bottleneck_forward.1} parent=1 // loop_footer_branch
      %18 = sbr.rel target = $region3
    $region8: #{bottleneck_forward.1} parent=1 // loop_exit
      _
    %2507 = vsyncpa [#allocation4], 1
    %s2508 = scalar_lea.sflag [#allocation4], 1
    %2509 = vsyncpa %s2508, 1

</llo_original>
